<compile_context>
chip_gen: v7x
topology: tpu7x:2x2x1
jax: 0.10.0
libtpu: 0.0.40
codegen_flags: <defaults>
</compile_context>

<pallas_src>
import functools

import jax
import jax.numpy as jnp
import numpy as np
from jax.experimental import pallas as pl
from jax.experimental.pallas import tpu as pltpu

CP_DIM = 56
EP_DIM = 5
OP_OTHER_DIM = 15
OP_PLANT_DIM = 4
HOURS = 24
HIDDEN = 128
IN_FEATURES = (CP_DIM + EP_DIM + OP_OTHER_DIM) * HOURS + OP_PLANT_DIM  # 1828

IN_PAD = 1920    # next multiple of 128 >= 1828
OUT_PAD = 128    # lane-dense output slab; real output is first OP_PLANT_DIM lanes
B_PAD = 8        # sublane-aligned batch
BN_EPS = 1e-5
LEAKY_SLOPE = 0.01


# ----------------------------------------------------------------------------- kernel
def _mlp_kernel(x_ref, w1_ref, wstack_ref, sh_ref, o_ref):
    # Layer 1: Linear(1828->128) with BN scale pre-folded into columns; shift add; LeakyReLU
    x = x_ref[...].astype(jnp.bfloat16)
    h = jnp.dot(x, w1_ref[...], preferred_element_type=jnp.float32)
    h = h + sh_ref[0:1, :]
    h = jnp.where(h > 0, h, LEAKY_SLOPE * h)
    # Layer 2
    h = jnp.dot(h.astype(jnp.bfloat16), wstack_ref[0],
                preferred_element_type=jnp.float32)
    h = h + sh_ref[1:2, :]
    h = jnp.where(h > 0, h, LEAKY_SLOPE * h)
    # Layer 3
    h = jnp.dot(h.astype(jnp.bfloat16), wstack_ref[1],
                preferred_element_type=jnp.float32)
    h = h + sh_ref[2:3, :]
    h = jnp.where(h > 0, h, LEAKY_SLOPE * h)
    # Output layer: Linear(128->4), stored in a 128-wide zero-padded slab
    o_ref[...] = jnp.dot(h.astype(jnp.bfloat16), wstack_ref[2],
                         preferred_element_type=jnp.float32) + sh_ref[3:4, :]


_VMEM_SPEC = pl.BlockSpec(memory_space=pltpu.MemorySpace.VMEM)

_COST = pl.CostEstimate(
    flops=2 * B_PAD * (IN_PAD * HIDDEN + 3 * HIDDEN * HIDDEN),
    transcendentals=0,
    bytes_accessed=(IN_PAD * HIDDEN * 2          # w1 bf16
                    + 3 * HIDDEN * HIDDEN * 2    # wstack bf16
                    + 8 * HIDDEN * 4             # shifts f32
                    + B_PAD * IN_PAD * 4         # x f32
                    + B_PAD * OUT_PAD * 4))      # out f32


# ----------------------------------------------------------------------------- params
def init_params(key):
    """Deterministic synthetic parameters matching the torch module's shapes (f32)."""
    ks = jax.random.split(key, 16)
    p = {}
    # Linear weights stored as (in, out) so the computation is x @ W.
    p["w1"] = jax.random.normal(ks[0], (IN_FEATURES, HIDDEN), jnp.float32) * 0.02
    p["b1"] = jax.random.normal(ks[1], (HIDDEN,), jnp.float32) * 0.02
    p["w2"] = jax.random.normal(ks[2], (HIDDEN, HIDDEN), jnp.float32) * 0.05
    p["b2"] = jax.random.normal(ks[3], (HIDDEN,), jnp.float32) * 0.02
    p["w3"] = jax.random.normal(ks[4], (HIDDEN, HIDDEN), jnp.float32) * 0.05
    p["b3"] = jax.random.normal(ks[5], (HIDDEN,), jnp.float32) * 0.02
    p["w4"] = jax.random.normal(ks[6], (HIDDEN, OP_PLANT_DIM), jnp.float32) * 0.05
    p["b4"] = jax.random.normal(ks[7], (OP_PLANT_DIM,), jnp.float32) * 0.02
    # BatchNorm1d parameters / running stats (eval mode)
    for i, base in enumerate([8, 10, 12]):
        p[f"bn{i+1}_gamma"] = 1.0 + 0.1 * jax.random.normal(ks[base], (HIDDEN,), jnp.float32)
        p[f"bn{i+1}_beta"] = 0.1 * jax.random.normal(ks[base + 1], (HIDDEN,), jnp.float32)
        p[f"bn{i+1}_mean"] = 0.05 * jnp.arange(HIDDEN, dtype=jnp.float32) / HIDDEN
        p[f"bn{i+1}_var"] = 1.0 + 0.01 * jnp.arange(HIDDEN, dtype=jnp.float32) / HIDDEN
    return p


def prepare_params(params):
    """One-time offline prep: fold BN into weights, pad, cast to bf16, coalesce."""
    def fold(b, g, bt, m, v):
        scale = g / jnp.sqrt(v + BN_EPS)
        shift = (b - m) * scale + bt
        return scale, shift

    s1, sh1 = fold(params["b1"], params["bn1_gamma"], params["bn1_beta"],
                   params["bn1_mean"], params["bn1_var"])
    s2, sh2 = fold(params["b2"], params["bn2_gamma"], params["bn2_beta"],
                   params["bn2_mean"], params["bn2_var"])
    s3, sh3 = fold(params["b3"], params["bn3_gamma"], params["bn3_beta"],
                   params["bn3_mean"], params["bn3_var"])

    # BN scale folded into weight columns (done once, offline).
    w1 = (jnp.zeros((IN_PAD, HIDDEN), jnp.float32)
          .at[:IN_FEATURES, :].set(params["w1"] * s1[None, :])).astype(jnp.bfloat16)
    w2 = (params["w2"] * s2[None, :]).astype(jnp.bfloat16)
    w3 = (params["w3"] * s3[None, :]).astype(jnp.bfloat16)
    w4 = (jnp.zeros((HIDDEN, OUT_PAD), jnp.float32)
          .at[:, :OP_PLANT_DIM].set(params["w4"])).astype(jnp.bfloat16)
    wstack = jnp.stack([w2, w3, w4], axis=0)            # (3, 128, 128) bf16

    shifts = jnp.zeros((8, OUT_PAD), jnp.float32)
    shifts = shifts.at[0, :HIDDEN].set(sh1)
    shifts = shifts.at[1, :HIDDEN].set(sh2)
    shifts = shifts.at[2, :HIDDEN].set(sh3)
    shifts = shifts.at[3, :OP_PLANT_DIM].set(params["b4"])

    return {"w1": w1, "wstack": wstack, "shifts": shifts}


# ----------------------------------------------------------------------------- forward
@jax.jit
def model_plant_forward(prepped, cp_last_24h, ep_last_24h, op_other_last_24h,
                        op_plant_last_day):
    """Forward pass identical to ModelPlant.forward (min_val is None)."""
    B = cp_last_24h.shape[0]
    # glue: concat along feature axis, flatten hours, append op_plant
    x = jnp.concatenate([cp_last_24h, ep_last_24h, op_other_last_24h], axis=2)  # (B,24,76)
    x = x.reshape(B, -1)                                                        # (B,1824)
    x = jnp.concatenate([x, op_plant_last_day], axis=1)                         # (B,1828)

    # pad activations to TPU-friendly shape (zero K-padding is a no-op for matmul)
    x_pad = jnp.zeros((B_PAD, IN_PAD), jnp.float32).at[:B, :IN_FEATURES].set(x)

    out_pad = pl.pallas_call(
        _mlp_kernel,
        out_shape=jax.ShapeDtypeStruct((B_PAD, OUT_PAD), jnp.float32),
        in_specs=[_VMEM_SPEC, _VMEM_SPEC, _VMEM_SPEC, _VMEM_SPEC],
        out_specs=_VMEM_SPEC,
        cost_estimate=_COST,
    )(x_pad, prepped["w1"], prepped["wstack"], prepped["shifts"])

    # TODO(synk): min_val clamp (torch.maximum) only applies when norm_data is given;
    # this configuration has min_val=None, matching the reference path.
    return out_pad[:B, :OP_PLANT_DIM]


# ----------------------------------------------------------------------------- reference
def _reference_forward(params, cp, ep, oo, opl):
    """Pure-JAX f32 reference for verification."""
    B = cp.shape[0]
    x = jnp.concatenate([cp, ep, oo], axis=2).reshape(B, -1)
    x = jnp.concatenate([x, opl], axis=1)

    def lin_bn_lrelu(h, w, b, g, bt, m, v):
        h = h @ w + b
        h = (h - m) / jnp.sqrt(v + BN_EPS) * g + bt
        return jnp.where(h > 0, h, LEAKY_SLOPE * h)

    h = lin_bn_lrelu(x, params["w1"], params["b1"], params["bn1_gamma"],
                     params["bn1_beta"], params["bn1_mean"], params["bn1_var"])
    h = lin_bn_lrelu(h, params["w2"], params["b2"], params["bn2_gamma"],
                     params["bn2_beta"], params["bn2_mean"], params["bn2_var"])
    h = lin_bn_lrelu(h, params["w3"], params["b3"], params["bn3_gamma"],
                     params["bn3_beta"], params["bn3_mean"], params["bn3_var"])
    return h @ params["w4"] + params["b4"]


if __name__ == "__main__":
    key = jax.random.PRNGKey(0)
    k_p, k_cp, k_ep, k_oo, k_op = jax.random.split(key, 5)

    params = init_params(k_p)
    prepped = jax.tree_util.tree_map(jax.block_until_ready, prepare_params(params))

    B = 2
    cp_last_24h = jax.random.normal(k_cp, (B, HOURS, CP_DIM), jnp.float32)
    ep_last_24h = jax.random.normal(k_ep, (B, HOURS, EP_DIM), jnp.float32)
    op_other_last_24h = jax.random.normal(k_oo, (B, HOURS, OP_OTHER_DIM), jnp.float32)
    op_plant_last_day = jax.random.normal(k_op, (B, OP_PLANT_DIM), jnp.float32)

    out = model_plant_forward(prepped, cp_last_24h, ep_last_24h,
                              op_other_last_24h, op_plant_last_day)
    out = jax.block_until_ready(out)

    ref = _reference_forward(params, cp_last_24h, ep_last_24h,
                             op_other_last_24h, op_plant_last_day)
    ref = jax.block_until_ready(ref)

    assert out.shape == (B, OP_PLANT_DIM), out.shape
    # Tolerance loosened vs the f32 reference because weights are stored in bf16
    # (f32 accumulation on the MXU).
    np.testing.assert_allclose(np.asarray(out), np.asarray(ref),
                               rtol=5e-2, atol=1e-2)
    print("KERNEL_OK")
</pallas_src>

<mosaic_0001>
module attributes {stable_mosaic.version = 11 : i64} {
  func.func @_mlp_kernel(%arg0: memref<8x1920xf32, #tpu.memory_space<vmem>>, %arg1: memref<1920x128xbf16, #tpu.memory_space<vmem>>, %arg2: memref<3x128x128xbf16, #tpu.memory_space<vmem>>, %arg3: memref<8x128xf32, #tpu.memory_space<vmem>>, %arg4: memref<8x128xf32, #tpu.memory_space<vmem>>) attributes {dimension_semantics = [], scalar_prefetch = 0 : i64, scratch_operands = 0 : i64, tpu.core_type = #tpu.core_type<tc>} {
    %c0 = arith.constant 0 : index
    %c0_0 = arith.constant 0 : index
    %0 = vector.load %arg0[%c0, %c0_0] : memref<8x1920xf32, #tpu.memory_space<vmem>>, vector<8x1920xf32>
    %1 = arith.truncf %0 : vector<8x1920xf32> to vector<8x1920xbf16>
    %c0_1 = arith.constant 0 : index
    %c0_2 = arith.constant 0 : index
    %2 = vector.load %arg1[%c0_1, %c0_2] : memref<1920x128xbf16, #tpu.memory_space<vmem>>, vector<1920x128xbf16>
    %cst = arith.constant dense<0.000000e+00> : vector<8x128xf32>
    %3 = tpu.matmul %1, %2, %cst {dimension_numbers = #tpu.dot_dimension_numbers<[1], [0], [0], [1], [0, 0, 1, 1], [], []>} : vector<8x1920xbf16>, vector<1920x128xbf16>, vector<8x128xf32> -> vector<8x128xf32>
    %c0_3 = arith.constant 0 : index
    %c0_4 = arith.constant 0 : index
    %4 = vector.load %arg3[%c0_3, %c0_4] : memref<8x128xf32, #tpu.memory_space<vmem>>, vector<1x128xf32>
    %5 = vector.broadcast %4 : vector<1x128xf32> to vector<8x128xf32>
    %6 = arith.addf %3, %5 : vector<8x128xf32>
    %cst_5 = arith.constant 0.000000e+00 : f32
    %7 = vector.broadcast %cst_5 : f32 to vector<8x128xf32>
    %8 = arith.cmpf ogt, %6, %7 : vector<8x128xf32>
    %cst_6 = arith.constant 0.00999999977 : f32
    %9 = vector.broadcast %cst_6 : f32 to vector<8x128xf32>
    %10 = arith.mulf %9, %6 : vector<8x128xf32>
    %11 = arith.select %8, %6, %10 : vector<8x128xi1>, vector<8x128xf32>
    %12 = arith.truncf %11 : vector<8x128xf32> to vector<8x128xbf16>
    %c0_7 = arith.constant 0 : index
    %c0_8 = arith.constant 0 : index
    %c0_9 = arith.constant 0 : index
    %13 = vector.load %arg2[%c0_7, %c0_8, %c0_9] : memref<3x128x128xbf16, #tpu.memory_space<vmem>>, vector<1x128x128xbf16>
    %14 = vector.shape_cast %13 : vector<1x128x128xbf16> to vector<128x128xbf16>
    %cst_10 = arith.constant dense<0.000000e+00> : vector<8x128xf32>
    %15 = tpu.matmul %12, %14, %cst_10 {dimension_numbers = #tpu.dot_dimension_numbers<[1], [0], [0], [1], [0, 0, 1, 1], [], []>} : vector<8x128xbf16>, vector<128x128xbf16>, vector<8x128xf32> -> vector<8x128xf32>
    %c1 = arith.constant 1 : index
    %c0_11 = arith.constant 0 : index
    %16 = vector.load %arg3[%c1, %c0_11] : memref<8x128xf32, #tpu.memory_space<vmem>>, vector<1x128xf32>
    %17 = vector.broadcast %16 : vector<1x128xf32> to vector<8x128xf32>
    %18 = arith.addf %15, %17 : vector<8x128xf32>
    %cst_12 = arith.constant 0.000000e+00 : f32
    %19 = vector.broadcast %cst_12 : f32 to vector<8x128xf32>
    %20 = arith.cmpf ogt, %18, %19 : vector<8x128xf32>
    %cst_13 = arith.constant 0.00999999977 : f32
    %21 = vector.broadcast %cst_13 : f32 to vector<8x128xf32>
    %22 = arith.mulf %21, %18 : vector<8x128xf32>
    %23 = arith.select %20, %18, %22 : vector<8x128xi1>, vector<8x128xf32>
    %24 = arith.truncf %23 : vector<8x128xf32> to vector<8x128xbf16>
    %c1_14 = arith.constant 1 : index
    %c0_15 = arith.constant 0 : index
    %c0_16 = arith.constant 0 : index
    %25 = vector.load %arg2[%c1_14, %c0_15, %c0_16] : memref<3x128x128xbf16, #tpu.memory_space<vmem>>, vector<1x128x128xbf16>
    %26 = vector.shape_cast %25 : vector<1x128x128xbf16> to vector<128x128xbf16>
    %cst_17 = arith.constant dense<0.000000e+00> : vector<8x128xf32>
    %27 = tpu.matmul %24, %26, %cst_17 {dimension_numbers = #tpu.dot_dimension_numbers<[1], [0], [0], [1], [0, 0, 1, 1], [], []>} : vector<8x128xbf16>, vector<128x128xbf16>, vector<8x128xf32> -> vector<8x128xf32>
    %c2 = arith.constant 2 : index
    %c0_18 = arith.constant 0 : index
    %28 = vector.load %arg3[%c2, %c0_18] : memref<8x128xf32, #tpu.memory_space<vmem>>, vector<1x128xf32>
    %29 = vector.broadcast %28 : vector<1x128xf32> to vector<8x128xf32>
    %30 = arith.addf %27, %29 : vector<8x128xf32>
    %cst_19 = arith.constant 0.000000e+00 : f32
    %31 = vector.broadcast %cst_19 : f32 to vector<8x128xf32>
    %32 = arith.cmpf ogt, %30, %31 : vector<8x128xf32>
    %cst_20 = arith.constant 0.00999999977 : f32
    %33 = vector.broadcast %cst_20 : f32 to vector<8x128xf32>
    %34 = arith.mulf %33, %30 : vector<8x128xf32>
    %35 = arith.select %32, %30, %34 : vector<8x128xi1>, vector<8x128xf32>
    %36 = arith.truncf %35 : vector<8x128xf32> to vector<8x128xbf16>
    %c2_21 = arith.constant 2 : index
    %c0_22 = arith.constant 0 : index
    %c0_23 = arith.constant 0 : index
    %37 = vector.load %arg2[%c2_21, %c0_22, %c0_23] : memref<3x128x128xbf16, #tpu.memory_space<vmem>>, vector<1x128x128xbf16>
    %38 = vector.shape_cast %37 : vector<1x128x128xbf16> to vector<128x128xbf16>
    %cst_24 = arith.constant dense<0.000000e+00> : vector<8x128xf32>
    %39 = tpu.matmul %36, %38, %cst_24 {dimension_numbers = #tpu.dot_dimension_numbers<[1], [0], [0], [1], [0, 0, 1, 1], [], []>} : vector<8x128xbf16>, vector<128x128xbf16>, vector<8x128xf32> -> vector<8x128xf32>
    %c3 = arith.constant 3 : index
    %c0_25 = arith.constant 0 : index
    %40 = vector.load %arg3[%c3, %c0_25] : memref<8x128xf32, #tpu.memory_space<vmem>>, vector<1x128xf32>
    %41 = vector.broadcast %40 : vector<1x128xf32> to vector<8x128xf32>
    %42 = arith.addf %39, %41 : vector<8x128xf32>
    %c0_26 = arith.constant 0 : index
    %c0_27 = arith.constant 0 : index
    %43 = vector.load %arg4[%c0_26, %c0_27] : memref<8x128xf32, #tpu.memory_space<vmem>>, vector<8x128xf32>
    tpu.vector_store %arg4[%c0_26, %c0_27], %42 {strides = array<i32>} : memref<8x128xf32, #tpu.memory_space<vmem>>, vector<8x128xf32>,
    return
  }
}

</mosaic_0001>

<llo_original>
// kernel: model_plant_forward.1
$region0: #{model_plant_forward.1}
  #allocation0 [shape = 'u32[]', space=smem, size = 0x4, offset = 0x4, fixed_abs, tag = 'smem constant byte address 0x4 - core index']
  #allocation1 [shape = 'u32[144,128]{1,0:T(1,128)}', space=vmem, size = 0x12000, scoped, tag = 'internal scratch']
  %s0 = inlined_call_operand.vmem [shape: f32[8,1920], index: 0, kind: input, shape index: {}]
  %s1 = inlined_call_operand.hbm [shape: bf16[1920,128], index: 1, kind: input, shape index: {}]
  %s2 = inlined_call_operand.vmem [shape: bf16[3,128,128], index: 2, kind: input, shape index: {}]
  %s3 = inlined_call_operand.vmem [shape: f32[8,128], index: 3, kind: input, shape index: {}]
  %s4 = inlined_call_operand.vmem [shape: f32[8,128], index: 4, kind: output, shape index: {}]
  %s5 = sld [smem:[#allocation0]]
  $region30: #{model_plant_forward.1} parent=0
    _
  %s7 = ssub.s32 1, %s5
  %s8 = scalar_select 0, %s7, %s5
  $region1: #{model_plant_forward.1} parent=0
    #allocation2 [shape = 'u8[491520]{0}', space=vmem, size = 0x78000, scoped, tag = 'input window, operand 1, single buffered']
    #allocation3 [shape = 's32[1]{0}', space=sflag, size = 0x4, scoped, tag = 'scoped memory for model_plant_forward.1']
    %9 = vsyncpa [#allocation3], 0
    // Predicated region
    $region2: #{model_plant_forward.1} parent=1 // pred_check
      _
    $region3: #{model_plant_forward.1} parent=1 // pred_check_branch
      %11 = sbr.rel (0) target = $region5
    $region4: #{model_plant_forward.1} parent=1 // pred_region
      _
    $region5: #{model_plant_forward.1} parent=1 // pred_fallthru
      _
    // Predicated region
    $region6: #{model_plant_forward.1} parent=1 // pred_check
      _
    $region7: #{model_plant_forward.1} parent=1 // pred_check_branch
      %13 = sbr.rel (0) target = $region9
    $region8: #{model_plant_forward.1} parent=1 // pred_region
      %s15 = ssub.s32 15360, 15360
      %16 = vsyncadd [#allocation3], %s15
      %s17 = sshll.u32 [#allocation2], 4
      %s18 = int_to_ptr.vmem [resolvable:$true] %s17
      %23 = dma.hbm_to_vmem [thread:$0]  %s1, 15360, %s18, [#allocation3], 64, 64, 4
    $region9: #{model_plant_forward.1} parent=1 // pred_fallthru
      _
    // Predicated region
    $region10: #{model_plant_forward.1} parent=1 // pred_check
      _
    $region11: #{model_plant_forward.1} parent=1 // pred_check_branch
      %25 = sbr.rel (0) target = $region13
    $region12: #{model_plant_forward.1} parent=1 // pred_region
      _
    $region13: #{model_plant_forward.1} parent=1 // pred_fallthru
      _
    // Predicated region
    $region14: #{model_plant_forward.1} parent=1 // pred_check
      _
    $region15: #{model_plant_forward.1} parent=1 // pred_check_branch
      %27 = sbr.rel (0) target = $region17
    $region16: #{model_plant_forward.1} parent=1 // pred_region
      _
    $region17: #{model_plant_forward.1} parent=1 // pred_fallthru
      _
    // Predicated region
    $region18: #{model_plant_forward.1} parent=1 // pred_check
      _
    $region19: #{model_plant_forward.1} parent=1 // pred_check_branch
      %29 = sbr.rel (0) target = $region21
    $region20: #{model_plant_forward.1} parent=1 // pred_region
      %30 = dma.done [#allocation3], 15360
    $region21: #{model_plant_forward.1} parent=1 // pred_fallthru
      _
    %v32 = vld [vmem:[%s0] sm:$0xff]
    %v33 = vld [vmem:[%s0 + $0x8] sm:$0xff]
    %v34 = vld [vmem:[%s0 + $0x10] sm:$0xff]
    %v35 = vld [vmem:[%s0 + $0x18] sm:$0xff]
    %v36 = vld [vmem:[%s0 + $0x20] sm:$0xff]
    %v37 = vld [vmem:[%s0 + $0x28] sm:$0xff]
    %v38 = vld [vmem:[%s0 + $0x30] sm:$0xff]
    %v39 = vld [vmem:[%s0 + $0x38] sm:$0xff]
    %v40 = vld [vmem:[%s0 + $0x40] sm:$0xff]
    %v41 = vld [vmem:[%s0 + $0x48] sm:$0xff]
    %v42 = vld [vmem:[%s0 + $0x50] sm:$0xff]
    %v43 = vld [vmem:[%s0 + $0x58] sm:$0xff]
    %v44 = vld [vmem:[%s0 + $0x60] sm:$0xff]
    %v45 = vld [vmem:[%s0 + $0x68] sm:$0xff]
    %v46 = vld [vmem:[%s0 + $0x70] sm:$0xff]
    %v47 = vpack.c.bf16 %v32, %v32
    %v48 = vpack.c.bf16 %v33, %v33
    %v49 = vpack.c.bf16 %v34, %v34
    %v50 = vpack.c.bf16 %v35, %v35
    %v51 = vpack.c.bf16 %v36, %v36
    %v52 = vpack.c.bf16 %v37, %v37
    %v53 = vpack.c.bf16 %v38, %v38
    %v54 = vpack.c.bf16 %v39, %v39
    %v55 = vpack.c.bf16 %v40, %v40
    %v56 = vpack.c.bf16 %v41, %v41
    %v57 = vpack.c.bf16 %v42, %v42
    %v58 = vpack.c.bf16 %v43, %v43
    %v59 = vpack.c.bf16 %v44, %v44
    %v60 = vpack.c.bf16 %v45, %v45
    %v61 = vpack.c.bf16 %v46, %v46
    %v62 = vld [vmem:[#allocation2] sm:$0xf]
    %v63 = vld [vmem:[#allocation2 + $0x4] sm:$0xf]
    %v64 = vld [vmem:[#allocation2 + $0x8] sm:$0xf]
    %v65 = vld [vmem:[#allocation2 + $0xc] sm:$0xf]
    %v66 = vld [vmem:[#allocation2 + $0x10] sm:$0xf]
    %v67 = vld [vmem:[#allocation2 + $0x14] sm:$0xf]
    %v68 = vld [vmem:[#allocation2 + $0x18] sm:$0xf]
    %v69 = vld [vmem:[#allocation2 + $0x1c] sm:$0xf]
    %v70 = vld [vmem:[#allocation2 + $0x20] sm:$0xf]
    %v71 = vld [vmem:[#allocation2 + $0x24] sm:$0xf]
    %v72 = vld [vmem:[#allocation2 + $0x28] sm:$0xf]
    %v73 = vld [vmem:[#allocation2 + $0x2c] sm:$0xf]
    %v74 = vld [vmem:[#allocation2 + $0x30] sm:$0xf]
    %v75 = vld [vmem:[#allocation2 + $0x34] sm:$0xf]
    %v76 = vld [vmem:[#allocation2 + $0x38] sm:$0xf]
    %v77 = vld [vmem:[#allocation2 + $0x3c] sm:$0xf]
    %v78 = vld [vmem:[#allocation2 + $0x40] sm:$0xf]
    %v79 = vld [vmem:[#allocation2 + $0x44] sm:$0xf]
    %v80 = vld [vmem:[#allocation2 + $0x48] sm:$0xf]
    %v81 = vld [vmem:[#allocation2 + $0x4c] sm:$0xf]
    %v82 = vld [vmem:[#allocation2 + $0x50] sm:$0xf]
    %v83 = vld [vmem:[#allocation2 + $0x54] sm:$0xf]
    %v84 = vld [vmem:[#allocation2 + $0x58] sm:$0xf]
    %v85 = vld [vmem:[#allocation2 + $0x5c] sm:$0xf]
    %v86 = vld [vmem:[#allocation2 + $0x60] sm:$0xf]
    %v87 = vld [vmem:[#allocation2 + $0x64] sm:$0xf]
    %v88 = vld [vmem:[#allocation2 + $0x68] sm:$0xf]
    %v89 = vld [vmem:[#allocation2 + $0x6c] sm:$0xf]
    %v90 = vld [vmem:[#allocation2 + $0x70] sm:$0xf]
    %v91 = vld [vmem:[#allocation2 + $0x74] sm:$0xf]
    %v92 = vld [vmem:[#allocation2 + $0x78] sm:$0xf]
    %v93 = vld [vmem:[#allocation2 + $0x7c] sm:$0xf]
    %v94 = vld [vmem:[#allocation2 + $0x80] sm:$0xf]
    %v95 = vld [vmem:[#allocation2 + $0x84] sm:$0xf]
    %v96 = vld [vmem:[#allocation2 + $0x88] sm:$0xf]
    %v97 = vld [vmem:[#allocation2 + $0x8c] sm:$0xf]
    %v98 = vld [vmem:[#allocation2 + $0x90] sm:$0xf]
    %v99 = vld [vmem:[#allocation2 + $0x94] sm:$0xf]
    %v100 = vld [vmem:[#allocation2 + $0x98] sm:$0xf]
    %v101 = vld [vmem:[#allocation2 + $0x9c] sm:$0xf]
    %v102 = vld [vmem:[#allocation2 + $0xa0] sm:$0xf]
    %v103 = vld [vmem:[#allocation2 + $0xa4] sm:$0xf]
    %v104 = vld [vmem:[#allocation2 + $0xa8] sm:$0xf]
    %v105 = vld [vmem:[#allocation2 + $0xac] sm:$0xf]
    %v106 = vld [vmem:[#allocation2 + $0xb0] sm:$0xf]
    %v107 = vld [vmem:[#allocation2 + $0xb4] sm:$0xf]
    %v108 = vld [vmem:[#allocation2 + $0xb8] sm:$0xf]
    %v109 = vld [vmem:[#allocation2 + $0xbc] sm:$0xf]
    %v110 = vld [vmem:[#allocation2 + $0xc0] sm:$0xf]
    %v111 = vld [vmem:[#allocation2 + $0xc4] sm:$0xf]
    %v112 = vld [vmem:[#allocation2 + $0xc8] sm:$0xf]
    %v113 = vld [vmem:[#allocation2 + $0xcc] sm:$0xf]
    %v114 = vld [vmem:[#allocation2 + $0xd0] sm:$0xf]
    %v115 = vld [vmem:[#allocation2 + $0xd4] sm:$0xf]
    %v116 = vld [vmem:[#allocation2 + $0xd8] sm:$0xf]
    %v117 = vld [vmem:[#allocation2 + $0xdc] sm:$0xf]
    %v118 = vld [vmem:[#allocation2 + $0xe0] sm:$0xf]
    %v119 = vld [vmem:[#allocation2 + $0xe4] sm:$0xf]
    %v120 = vld [vmem:[#allocation2 + $0xe8] sm:$0xf]
    %v121 = vld [vmem:[#allocation2 + $0xec] sm:$0xf]
    %v122 = vld [vmem:[#allocation2 + $0xf0] sm:$0xf]
    %v123 = vld [vmem:[#allocation2 + $0xf4] sm:$0xf]
    %v124 = vld [vmem:[#allocation2 + $0xf8] sm:$0xf]
    %v125 = vld [vmem:[#allocation2 + $0xfc] sm:$0xf]
    %v126 = vld [vmem:[#allocation2 + $0x100] sm:$0xf]
    %v127 = vld [vmem:[#allocation2 + $0x104] sm:$0xf]
    %v128 = vld [vmem:[#allocation2 + $0x108] sm:$0xf]
    %v129 = vld [vmem:[#allocation2 + $0x10c] sm:$0xf]
    %v130 = vld [vmem:[#allocation2 + $0x110] sm:$0xf]
    %v131 = vld [vmem:[#allocation2 + $0x114] sm:$0xf]
    %v132 = vld [vmem:[#allocation2 + $0x118] sm:$0xf]
    %v133 = vld [vmem:[#allocation2 + $0x11c] sm:$0xf]
    %v134 = vld [vmem:[#allocation2 + $0x120] sm:$0xf]
    %v135 = vld [vmem:[#allocation2 + $0x124] sm:$0xf]
    %v136 = vld [vmem:[#allocation2 + $0x128] sm:$0xf]
    %v137 = vld [vmem:[#allocation2 + $0x12c] sm:$0xf]
    %v138 = vld [vmem:[#allocation2 + $0x130] sm:$0xf]
    %v139 = vld [vmem:[#allocation2 + $0x134] sm:$0xf]
    %v140 = vld [vmem:[#allocation2 + $0x138] sm:$0xf]
    %v141 = vld [vmem:[#allocation2 + $0x13c] sm:$0xf]
    %v142 = vld [vmem:[#allocation2 + $0x140] sm:$0xf]
    %v143 = vld [vmem:[#allocation2 + $0x144] sm:$0xf]
    %v144 = vld [vmem:[#allocation2 + $0x148] sm:$0xf]
    %v145 = vld [vmem:[#allocation2 + $0x14c] sm:$0xf]
    %v146 = vld [vmem:[#allocation2 + $0x150] sm:$0xf]
    %v147 = vld [vmem:[#allocation2 + $0x154] sm:$0xf]
    %v148 = vld [vmem:[#allocation2 + $0x158] sm:$0xf]
    %v149 = vld [vmem:[#allocation2 + $0x15c] sm:$0xf]
    %v150 = vld [vmem:[#allocation2 + $0x160] sm:$0xf]
    %v151 = vld [vmem:[#allocation2 + $0x164] sm:$0xf]
    %v152 = vld [vmem:[#allocation2 + $0x168] sm:$0xf]
    %v153 = vld [vmem:[#allocation2 + $0x16c] sm:$0xf]
    %v154 = vld [vmem:[#allocation2 + $0x170] sm:$0xf]
    %v155 = vld [vmem:[#allocation2 + $0x174] sm:$0xf]
    %v156 = vld [vmem:[#allocation2 + $0x178] sm:$0xf]
    %v157 = vld [vmem:[#allocation2 + $0x17c] sm:$0xf]
    %v158 = vld [vmem:[#allocation2 + $0x180] sm:$0xf]
    %v159 = vld [vmem:[#allocation2 + $0x184] sm:$0xf]
    %v160 = vld [vmem:[#allocation2 + $0x188] sm:$0xf]
    %v161 = vld [vmem:[#allocation2 + $0x18c] sm:$0xf]
    %v162 = vld [vmem:[#allocation2 + $0x190] sm:$0xf]
    %v163 = vld [vmem:[#allocation2 + $0x194] sm:$0xf]
    %v164 = vld [vmem:[#allocation2 + $0x198] sm:$0xf]
    %v165 = vld [vmem:[#allocation2 + $0x19c] sm:$0xf]
    %v166 = vld [vmem:[#allocation2 + $0x1a0] sm:$0xf]
    %v167 = vld [vmem:[#allocation2 + $0x1a4] sm:$0xf]
    %v168 = vld [vmem:[#allocation2 + $0x1a8] sm:$0xf]
    %v169 = vld [vmem:[#allocation2 + $0x1ac] sm:$0xf]
    %v170 = vld [vmem:[#allocation2 + $0x1b0] sm:$0xf]
    %v171 = vld [vmem:[#allocation2 + $0x1b4] sm:$0xf]
    %v172 = vld [vmem:[#allocation2 + $0x1b8] sm:$0xf]
    %v173 = vld [vmem:[#allocation2 + $0x1bc] sm:$0xf]
    %v174 = vld [vmem:[#allocation2 + $0x1c0] sm:$0xf]
    %v175 = vld [vmem:[#allocation2 + $0x1c4] sm:$0xf]
    %v176 = vld [vmem:[#allocation2 + $0x1c8] sm:$0xf]
    %v177 = vld [vmem:[#allocation2 + $0x1cc] sm:$0xf]
    %v178 = vld [vmem:[#allocation2 + $0x1d0] sm:$0xf]
    %v179 = vld [vmem:[#allocation2 + $0x1d4] sm:$0xf]
    %v180 = vld [vmem:[#allocation2 + $0x1d8] sm:$0xf]
    %v181 = vld [vmem:[#allocation2 + $0x1dc] sm:$0xf]
    %v182 = vld [vmem:[#allocation2 + $0x1e0] sm:$0xf]
    %v183 = vld [vmem:[#allocation2 + $0x1e4] sm:$0xf]
    %v184 = vld [vmem:[#allocation2 + $0x1e8] sm:$0xf]
    %v185 = vld [vmem:[#allocation2 + $0x1ec] sm:$0xf]
    %v186 = vld [vmem:[#allocation2 + $0x1f0] sm:$0xf]
    %v187 = vld [vmem:[#allocation2 + $0x1f4] sm:$0xf]
    %v188 = vld [vmem:[#allocation2 + $0x1f8] sm:$0xf]
    %v189 = vld [vmem:[#allocation2 + $0x1fc] sm:$0xf]
    %v190 = vld [vmem:[#allocation2 + $0x200] sm:$0xf]
    %v191 = vld [vmem:[#allocation2 + $0x204] sm:$0xf]
    %v192 = vld [vmem:[#allocation2 + $0x208] sm:$0xf]
    %v193 = vld [vmem:[#allocation2 + $0x20c] sm:$0xf]
    %v194 = vld [vmem:[#allocation2 + $0x210] sm:$0xf]
    %v195 = vld [vmem:[#allocation2 + $0x214] sm:$0xf]
    %v196 = vld [vmem:[#allocation2 + $0x218] sm:$0xf]
    %v197 = vld [vmem:[#allocation2 + $0x21c] sm:$0xf]
    %v198 = vld [vmem:[#allocation2 + $0x220] sm:$0xf]
    %v199 = vld [vmem:[#allocation2 + $0x224] sm:$0xf]
    %v200 = vld [vmem:[#allocation2 + $0x228] sm:$0xf]
    %v201 = vld [vmem:[#allocation2 + $0x22c] sm:$0xf]
    %v202 = vld [vmem:[#allocation2 + $0x230] sm:$0xf]
    %v203 = vld [vmem:[#allocation2 + $0x234] sm:$0xf]
    %v204 = vld [vmem:[#allocation2 + $0x238] sm:$0xf]
    %v205 = vld [vmem:[#allocation2 + $0x23c] sm:$0xf]
    %v206 = vld [vmem:[#allocation2 + $0x240] sm:$0xf]
    %v207 = vld [vmem:[#allocation2 + $0x244] sm:$0xf]
    %v208 = vld [vmem:[#allocation2 + $0x248] sm:$0xf]
    %v209 = vld [vmem:[#allocation2 + $0x24c] sm:$0xf]
    %v210 = vld [vmem:[#allocation2 + $0x250] sm:$0xf]
    %v211 = vld [vmem:[#allocation2 + $0x254] sm:$0xf]
    %v212 = vld [vmem:[#allocation2 + $0x258] sm:$0xf]
    %v213 = vld [vmem:[#allocation2 + $0x25c] sm:$0xf]
    %v214 = vld [vmem:[#allocation2 + $0x260] sm:$0xf]
    %v215 = vld [vmem:[#allocation2 + $0x264] sm:$0xf]
    %v216 = vld [vmem:[#allocation2 + $0x268] sm:$0xf]
    %v217 = vld [vmem:[#allocation2 + $0x26c] sm:$0xf]
    %v218 = vld [vmem:[#allocation2 + $0x270] sm:$0xf]
    %v219 = vld [vmem:[#allocation2 + $0x274] sm:$0xf]
    %v220 = vld [vmem:[#allocation2 + $0x278] sm:$0xf]
    %v221 = vld [vmem:[#allocation2 + $0x27c] sm:$0xf]
    %v222 = vld [vmem:[#allocation2 + $0x280] sm:$0xf]
    %v223 = vld [vmem:[#allocation2 + $0x284] sm:$0xf]
    %v224 = vld [vmem:[#allocation2 + $0x288] sm:$0xf]
    %v225 = vld [vmem:[#allocation2 + $0x28c] sm:$0xf]
    %v226 = vld [vmem:[#allocation2 + $0x290] sm:$0xf]
    %v227 = vld [vmem:[#allocation2 + $0x294] sm:$0xf]
    %v228 = vld [vmem:[#allocation2 + $0x298] sm:$0xf]
    %v229 = vld [vmem:[#allocation2 + $0x29c] sm:$0xf]
    %v230 = vld [vmem:[#allocation2 + $0x2a0] sm:$0xf]
    %v231 = vld [vmem:[#allocation2 + $0x2a4] sm:$0xf]
    %v232 = vld [vmem:[#allocation2 + $0x2a8] sm:$0xf]
    %v233 = vld [vmem:[#allocation2 + $0x2ac] sm:$0xf]
    %v234 = vld [vmem:[#allocation2 + $0x2b0] sm:$0xf]
    %v235 = vld [vmem:[#allocation2 + $0x2b4] sm:$0xf]
    %v236 = vld [vmem:[#allocation2 + $0x2b8] sm:$0xf]
    %v237 = vld [vmem:[#allocation2 + $0x2bc] sm:$0xf]
    %v238 = vld [vmem:[#allocation2 + $0x2c0] sm:$0xf]
    %v239 = vld [vmem:[#allocation2 + $0x2c4] sm:$0xf]
    %v240 = vld [vmem:[#allocation2 + $0x2c8] sm:$0xf]
    %v241 = vld [vmem:[#allocation2 + $0x2cc] sm:$0xf]
    %v242 = vld [vmem:[#allocation2 + $0x2d0] sm:$0xf]
    %v243 = vld [vmem:[#allocation2 + $0x2d4] sm:$0xf]
    %v244 = vld [vmem:[#allocation2 + $0x2d8] sm:$0xf]
    %v245 = vld [vmem:[#allocation2 + $0x2dc] sm:$0xf]
    %v246 = vld [vmem:[#allocation2 + $0x2e0] sm:$0xf]
    %v247 = vld [vmem:[#allocation2 + $0x2e4] sm:$0xf]
    %v248 = vld [vmem:[#allocation2 + $0x2e8] sm:$0xf]
    %v249 = vld [vmem:[#allocation2 + $0x2ec] sm:$0xf]
    %v250 = vld [vmem:[#allocation2 + $0x2f0] sm:$0xf]
    %v251 = vld [vmem:[#allocation2 + $0x2f4] sm:$0xf]
    %v252 = vld [vmem:[#allocation2 + $0x2f8] sm:$0xf]
    %v253 = vld [vmem:[#allocation2 + $0x2fc] sm:$0xf]
    %v254 = vld [vmem:[#allocation2 + $0x300] sm:$0xf]
    %v255 = vld [vmem:[#allocation2 + $0x304] sm:$0xf]
    %v256 = vld [vmem:[#allocation2 + $0x308] sm:$0xf]
    %v257 = vld [vmem:[#allocation2 + $0x30c] sm:$0xf]
    %v258 = vld [vmem:[#allocation2 + $0x310] sm:$0xf]
    %v259 = vld [vmem:[#allocation2 + $0x314] sm:$0xf]
    %v260 = vld [vmem:[#allocation2 + $0x318] sm:$0xf]
    %v261 = vld [vmem:[#allocation2 + $0x31c] sm:$0xf]
    %v262 = vld [vmem:[#allocation2 + $0x320] sm:$0xf]
    %v263 = vld [vmem:[#allocation2 + $0x324] sm:$0xf]
    %v264 = vld [vmem:[#allocation2 + $0x328] sm:$0xf]
    %v265 = vld [vmem:[#allocation2 + $0x32c] sm:$0xf]
    %v266 = vld [vmem:[#allocation2 + $0x330] sm:$0xf]
    %v267 = vld [vmem:[#allocation2 + $0x334] sm:$0xf]
    %v268 = vld [vmem:[#allocation2 + $0x338] sm:$0xf]
    %v269 = vld [vmem:[#allocation2 + $0x33c] sm:$0xf]
    %v270 = vld [vmem:[#allocation2 + $0x340] sm:$0xf]
    %v271 = vld [vmem:[#allocation2 + $0x344] sm:$0xf]
    %v272 = vld [vmem:[#allocation2 + $0x348] sm:$0xf]
    %v273 = vld [vmem:[#allocation2 + $0x34c] sm:$0xf]
    %v274 = vld [vmem:[#allocation2 + $0x350] sm:$0xf]
    %v275 = vld [vmem:[#allocation2 + $0x354] sm:$0xf]
    %v276 = vld [vmem:[#allocation2 + $0x358] sm:$0xf]
    %v277 = vld [vmem:[#allocation2 + $0x35c] sm:$0xf]
    %v278 = vld [vmem:[#allocation2 + $0x360] sm:$0xf]
    %v279 = vld [vmem:[#allocation2 + $0x364] sm:$0xf]
    %v280 = vld [vmem:[#allocation2 + $0x368] sm:$0xf]
    %v281 = vld [vmem:[#allocation2 + $0x36c] sm:$0xf]
    %v282 = vld [vmem:[#allocation2 + $0x370] sm:$0xf]
    %v283 = vld [vmem:[#allocation2 + $0x374] sm:$0xf]
    %v284 = vld [vmem:[#allocation2 + $0x378] sm:$0xf]
    %v285 = vld [vmem:[#allocation2 + $0x37c] sm:$0xf]
    %v286 = vld [vmem:[#allocation2 + $0x380] sm:$0xf]
    %v287 = vld [vmem:[#allocation2 + $0x384] sm:$0xf]
    %v288 = vld [vmem:[#allocation2 + $0x388] sm:$0xf]
    %v289 = vld [vmem:[#allocation2 + $0x38c] sm:$0xf]
    %v290 = vld [vmem:[#allocation2 + $0x390] sm:$0xf]
    %v291 = vld [vmem:[#allocation2 + $0x394] sm:$0xf]
    %v292 = vld [vmem:[#allocation2 + $0x398] sm:$0xf]
    %v293 = vld [vmem:[#allocation2 + $0x39c] sm:$0xf]
    %v294 = vld [vmem:[#allocation2 + $0x3a0] sm:$0xf]
    %v295 = vld [vmem:[#allocation2 + $0x3a4] sm:$0xf]
    %v296 = vld [vmem:[#allocation2 + $0x3a8] sm:$0xf]
    %v297 = vld [vmem:[#allocation2 + $0x3ac] sm:$0xf]
    %v298 = vld [vmem:[#allocation2 + $0x3b0] sm:$0xf]
    %v299 = vld [vmem:[#allocation2 + $0x3b4] sm:$0xf]
    %v300 = vld [vmem:[#allocation2 + $0x3b8] sm:$0xf]
    %v301 = vld [vmem:[#allocation2 + $0x3bc] sm:$0xf]
    %v302 = vld [vmem:[%s3] sm:$0x1]
    %v303 = vlaneseq
    %v304 = vshrl.u32 %v303, 7
    %v305 = vsub.s32 0, %v304
    %v306 = vrot.slane %v302, %v305
    %v547 = vunpack.c.l.b16 %v62
    %v548 = vunpack.c.l.b16 %v63
    %v549 = vunpack.c.l.b16 %v64
    %v550 = vunpack.c.l.b16 %v65
    %v551 = vunpack.c.l.b16 %v66
    %v552 = vunpack.c.l.b16 %v67
    %v553 = vunpack.c.l.b16 %v68
    %v554 = vunpack.c.l.b16 %v69
    %v555 = vunpack.c.l.b16 %v70
    %v556 = vunpack.c.l.b16 %v71
    %v557 = vunpack.c.l.b16 %v72
    %v558 = vunpack.c.l.b16 %v73
    %v559 = vunpack.c.l.b16 %v74
    %v560 = vunpack.c.l.b16 %v75
    %v561 = vunpack.c.l.b16 %v76
    %v562 = vunpack.c.l.b16 %v77
    %v563 = vunpack.c.l.b16 %v78
    %v564 = vunpack.c.l.b16 %v79
    %v565 = vunpack.c.l.b16 %v80
    %v566 = vunpack.c.l.b16 %v81
    %v567 = vunpack.c.l.b16 %v82
    %v568 = vunpack.c.l.b16 %v83
    %v569 = vunpack.c.l.b16 %v84
    %v570 = vunpack.c.l.b16 %v85
    %v571 = vunpack.c.l.b16 %v86
    %v572 = vunpack.c.l.b16 %v87
    %v573 = vunpack.c.l.b16 %v88
    %v574 = vunpack.c.l.b16 %v89
    %v575 = vunpack.c.l.b16 %v90
    %v576 = vunpack.c.l.b16 %v91
    %v577 = vunpack.c.l.b16 %v92
    %v578 = vunpack.c.l.b16 %v93
    %v579 = vunpack.c.l.b16 %v94
    %v580 = vunpack.c.l.b16 %v95
    %v581 = vunpack.c.l.b16 %v96
    %v582 = vunpack.c.l.b16 %v97
    %v583 = vunpack.c.l.b16 %v98
    %v584 = vunpack.c.l.b16 %v99
    %v585 = vunpack.c.l.b16 %v100
    %v586 = vunpack.c.l.b16 %v101
    %v587 = vunpack.c.l.b16 %v102
    %v588 = vunpack.c.l.b16 %v103
    %v589 = vunpack.c.l.b16 %v104
    %v590 = vunpack.c.l.b16 %v105
    %v591 = vunpack.c.l.b16 %v106
    %v592 = vunpack.c.l.b16 %v107
    %v593 = vunpack.c.l.b16 %v108
    %v594 = vunpack.c.l.b16 %v109
    %v595 = vunpack.c.l.b16 %v110
    %v596 = vunpack.c.l.b16 %v111
    %v597 = vunpack.c.l.b16 %v112
    %v598 = vunpack.c.l.b16 %v113
    %v599 = vunpack.c.l.b16 %v114
    %v600 = vunpack.c.l.b16 %v115
    %v601 = vunpack.c.l.b16 %v116
    %v602 = vunpack.c.l.b16 %v117
    %v603 = vunpack.c.l.b16 %v118
    %v604 = vunpack.c.l.b16 %v119
    %v605 = vunpack.c.l.b16 %v120
    %v606 = vunpack.c.l.b16 %v121
    %v607 = vunpack.c.l.b16 %v122
    %v608 = vunpack.c.l.b16 %v123
    %v609 = vunpack.c.l.b16 %v124
    %v610 = vunpack.c.l.b16 %v125
    %v611 = vunpack.c.l.b16 %v126
    %v612 = vunpack.c.l.b16 %v127
    %v613 = vunpack.c.l.b16 %v128
    %v614 = vunpack.c.l.b16 %v129
    %v615 = vunpack.c.l.b16 %v130
    %v616 = vunpack.c.l.b16 %v131
    %v617 = vunpack.c.l.b16 %v132
    %v618 = vunpack.c.l.b16 %v133
    %v619 = vunpack.c.l.b16 %v134
    %v620 = vunpack.c.l.b16 %v135
    %v621 = vunpack.c.l.b16 %v136
    %v622 = vunpack.c.l.b16 %v137
    %v623 = vunpack.c.l.b16 %v138
    %v624 = vunpack.c.l.b16 %v139
    %v625 = vunpack.c.l.b16 %v140
    %v626 = vunpack.c.l.b16 %v141
    %v627 = vunpack.c.l.b16 %v142
    %v628 = vunpack.c.l.b16 %v143
    %v629 = vunpack.c.l.b16 %v144
    %v630 = vunpack.c.l.b16 %v145
    %v631 = vunpack.c.l.b16 %v146
    %v632 = vunpack.c.l.b16 %v147
    %v633 = vunpack.c.l.b16 %v148
    %v634 = vunpack.c.l.b16 %v149
    %v635 = vunpack.c.l.b16 %v150
    %v636 = vunpack.c.l.b16 %v151
    %v637 = vunpack.c.l.b16 %v152
    %v638 = vunpack.c.l.b16 %v153
    %v639 = vunpack.c.l.b16 %v154
    %v640 = vunpack.c.l.b16 %v155
    %v641 = vunpack.c.l.b16 %v156
    %v642 = vunpack.c.l.b16 %v157
    %v643 = vunpack.c.l.b16 %v158
    %v644 = vunpack.c.l.b16 %v159
    %v645 = vunpack.c.l.b16 %v160
    %v646 = vunpack.c.l.b16 %v161
    %v647 = vunpack.c.l.b16 %v162
    %v648 = vunpack.c.l.b16 %v163
    %v649 = vunpack.c.l.b16 %v164
    %v650 = vunpack.c.l.b16 %v165
    %v651 = vunpack.c.l.b16 %v166
    %v652 = vunpack.c.l.b16 %v167
    %v653 = vunpack.c.l.b16 %v168
    %v654 = vunpack.c.l.b16 %v169
    %v655 = vunpack.c.l.b16 %v170
    %v656 = vunpack.c.l.b16 %v171
    %v657 = vunpack.c.l.b16 %v172
    %v658 = vunpack.c.l.b16 %v173
    %v659 = vunpack.c.l.b16 %v174
    %v660 = vunpack.c.l.b16 %v175
    %v661 = vunpack.c.l.b16 %v176
    %v662 = vunpack.c.l.b16 %v177
    %v663 = vunpack.c.l.b16 %v178
    %v664 = vunpack.c.l.b16 %v179
    %v665 = vunpack.c.l.b16 %v180
    %v666 = vunpack.c.l.b16 %v181
    %v667 = vunpack.c.l.b16 %v182
    %v668 = vunpack.c.l.b16 %v183
    %v669 = vunpack.c.l.b16 %v184
    %v670 = vunpack.c.l.b16 %v185
    %v671 = vunpack.c.l.b16 %v186
    %v672 = vunpack.c.l.b16 %v187
    %v673 = vunpack.c.l.b16 %v188
    %v674 = vunpack.c.l.b16 %v189
    %v675 = vunpack.c.l.b16 %v190
    %v676 = vunpack.c.l.b16 %v191
    %v677 = vunpack.c.l.b16 %v192
    %v678 = vunpack.c.l.b16 %v193
    %v679 = vunpack.c.l.b16 %v194
    %v680 = vunpack.c.l.b16 %v195
    %v681 = vunpack.c.l.b16 %v196
    %v682 = vunpack.c.l.b16 %v197
    %v683 = vunpack.c.l.b16 %v198
    %v684 = vunpack.c.l.b16 %v199
    %v685 = vunpack.c.l.b16 %v200
    %v686 = vunpack.c.l.b16 %v201
    %v687 = vunpack.c.l.b16 %v202
    %v688 = vunpack.c.l.b16 %v203
    %v689 = vunpack.c.l.b16 %v204
    %v690 = vunpack.c.l.b16 %v205
    %v691 = vunpack.c.l.b16 %v206
    %v692 = vunpack.c.l.b16 %v207
    %v693 = vunpack.c.l.b16 %v208
    %v694 = vunpack.c.l.b16 %v209
    %v695 = vunpack.c.l.b16 %v210
    %v696 = vunpack.c.l.b16 %v211
    %v697 = vunpack.c.l.b16 %v212
    %v698 = vunpack.c.l.b16 %v213
    %v699 = vunpack.c.l.b16 %v214
    %v700 = vunpack.c.l.b16 %v215
    %v701 = vunpack.c.l.b16 %v216
    %v702 = vunpack.c.l.b16 %v217
    %v703 = vunpack.c.l.b16 %v218
    %v704 = vunpack.c.l.b16 %v219
    %v705 = vunpack.c.l.b16 %v220
    %v706 = vunpack.c.l.b16 %v221
    %v707 = vunpack.c.l.b16 %v222
    %v708 = vunpack.c.l.b16 %v223
    %v709 = vunpack.c.l.b16 %v224
    %v710 = vunpack.c.l.b16 %v225
    %v711 = vunpack.c.l.b16 %v226
    %v712 = vunpack.c.l.b16 %v227
    %v713 = vunpack.c.l.b16 %v228
    %v714 = vunpack.c.l.b16 %v229
    %v715 = vunpack.c.l.b16 %v230
    %v716 = vunpack.c.l.b16 %v231
    %v717 = vunpack.c.l.b16 %v232
    %v718 = vunpack.c.l.b16 %v233
    %v719 = vunpack.c.l.b16 %v234
    %v720 = vunpack.c.l.b16 %v235
    %v721 = vunpack.c.l.b16 %v236
    %v722 = vunpack.c.l.b16 %v237
    %v723 = vunpack.c.l.b16 %v238
    %v724 = vunpack.c.l.b16 %v239
    %v725 = vunpack.c.l.b16 %v240
    %v726 = vunpack.c.l.b16 %v241
    %v727 = vunpack.c.l.b16 %v242
    %v728 = vunpack.c.l.b16 %v243
    %v729 = vunpack.c.l.b16 %v244
    %v730 = vunpack.c.l.b16 %v245
    %v731 = vunpack.c.l.b16 %v246
    %v732 = vunpack.c.l.b16 %v247
    %v733 = vunpack.c.l.b16 %v248
    %v734 = vunpack.c.l.b16 %v249
    %v735 = vunpack.c.l.b16 %v250
    %v736 = vunpack.c.l.b16 %v251
    %v737 = vunpack.c.l.b16 %v252
    %v738 = vunpack.c.l.b16 %v253
    %v739 = vunpack.c.l.b16 %v254
    %v740 = vunpack.c.l.b16 %v255
    %v741 = vunpack.c.l.b16 %v256
    %v742 = vunpack.c.l.b16 %v257
    %v743 = vunpack.c.l.b16 %v258
    %v744 = vunpack.c.l.b16 %v259
    %v745 = vunpack.c.l.b16 %v260
    %v746 = vunpack.c.l.b16 %v261
    %v747 = vunpack.c.l.b16 %v262
    %v748 = vunpack.c.l.b16 %v263
    %v749 = vunpack.c.l.b16 %v264
    %v750 = vunpack.c.l.b16 %v265
    %v751 = vunpack.c.l.b16 %v266
    %v752 = vunpack.c.l.b16 %v267
    %v753 = vunpack.c.l.b16 %v268
    %v754 = vunpack.c.l.b16 %v269
    %v755 = vunpack.c.l.b16 %v270
    %v756 = vunpack.c.l.b16 %v271
    %v757 = vunpack.c.l.b16 %v272
    %v758 = vunpack.c.l.b16 %v273
    %v759 = vunpack.c.l.b16 %v274
    %v760 = vunpack.c.l.b16 %v275
    %v761 = vunpack.c.l.b16 %v276
    %v762 = vunpack.c.l.b16 %v277
    %v763 = vunpack.c.l.b16 %v278
    %v764 = vunpack.c.l.b16 %v279
    %v765 = vunpack.c.l.b16 %v280
    %v766 = vunpack.c.l.b16 %v281
    %v767 = vunpack.c.l.b16 %v282
    %v768 = vunpack.c.l.b16 %v283
    %v769 = vunpack.c.l.b16 %v284
    %v770 = vunpack.c.l.b16 %v285
    %v771 = vunpack.c.l.b16 %v286
    %v772 = vunpack.c.l.b16 %v287
    %v773 = vunpack.c.l.b16 %v288
    %v774 = vunpack.c.l.b16 %v289
    %v775 = vunpack.c.l.b16 %v290
    %v776 = vunpack.c.l.b16 %v291
    %v777 = vunpack.c.l.b16 %v292
    %v778 = vunpack.c.l.b16 %v293
    %v779 = vunpack.c.l.b16 %v294
    %v780 = vunpack.c.l.b16 %v295
    %v781 = vunpack.c.l.b16 %v296
    %v782 = vunpack.c.l.b16 %v297
    %v783 = vunpack.c.l.b16 %v298
    %v784 = vunpack.c.l.b16 %v299
    %v785 = vunpack.c.l.b16 %v300
    %v786 = vunpack.c.l.b16 %v301
    %v787 = vpack.c.b16 %v548, %v547
    %v788 = vpack.c.b16 %v550, %v549
    %v789 = vpack.c.b16 %v552, %v551
    %v790 = vpack.c.b16 %v554, %v553
    %v791 = vpack.c.b16 %v556, %v555
    %v792 = vpack.c.b16 %v558, %v557
    %v793 = vpack.c.b16 %v560, %v559
    %v794 = vpack.c.b16 %v562, %v561
    %v795 = vpack.c.b16 %v564, %v563
    %v796 = vpack.c.b16 %v566, %v565
    %v797 = vpack.c.b16 %v568, %v567
    %v798 = vpack.c.b16 %v570, %v569
    %v799 = vpack.c.b16 %v572, %v571
    %v800 = vpack.c.b16 %v574, %v573
    %v801 = vpack.c.b16 %v576, %v575
    %v802 = vpack.c.b16 %v578, %v577
    %v803 = vpack.c.b16 %v580, %v579
    %v804 = vpack.c.b16 %v582, %v581
    %v805 = vpack.c.b16 %v584, %v583
    %v806 = vpack.c.b16 %v586, %v585
    %v807 = vpack.c.b16 %v588, %v587
    %v808 = vpack.c.b16 %v590, %v589
    %v809 = vpack.c.b16 %v592, %v591
    %v810 = vpack.c.b16 %v594, %v593
    %v811 = vpack.c.b16 %v596, %v595
    %v812 = vpack.c.b16 %v598, %v597
    %v813 = vpack.c.b16 %v600, %v599
    %v814 = vpack.c.b16 %v602, %v601
    %v815 = vpack.c.b16 %v604, %v603
    %v816 = vpack.c.b16 %v606, %v605
    %v817 = vpack.c.b16 %v608, %v607
    %v818 = vpack.c.b16 %v610, %v609
    %v819 = vpack.c.b16 %v612, %v611
    %v820 = vpack.c.b16 %v614, %v613
    %v821 = vpack.c.b16 %v616, %v615
    %v822 = vpack.c.b16 %v618, %v617
    %v823 = vpack.c.b16 %v620, %v619
    %v824 = vpack.c.b16 %v622, %v621
    %v825 = vpack.c.b16 %v624, %v623
    %v826 = vpack.c.b16 %v626, %v625
    %v827 = vpack.c.b16 %v628, %v627
    %v828 = vpack.c.b16 %v630, %v629
    %v829 = vpack.c.b16 %v632, %v631
    %v830 = vpack.c.b16 %v634, %v633
    %v831 = vpack.c.b16 %v636, %v635
    %v832 = vpack.c.b16 %v638, %v637
    %v833 = vpack.c.b16 %v640, %v639
    %v834 = vpack.c.b16 %v642, %v641
    %v835 = vpack.c.b16 %v644, %v643
    %v836 = vpack.c.b16 %v646, %v645
    %v837 = vpack.c.b16 %v648, %v647
    %v838 = vpack.c.b16 %v650, %v649
    %v839 = vpack.c.b16 %v652, %v651
    %v840 = vpack.c.b16 %v654, %v653
    %v841 = vpack.c.b16 %v656, %v655
    %v842 = vpack.c.b16 %v658, %v657
    %v843 = vpack.c.b16 %v660, %v659
    %v844 = vpack.c.b16 %v662, %v661
    %v845 = vpack.c.b16 %v664, %v663
    %v846 = vpack.c.b16 %v666, %v665
    %v847 = vpack.c.b16 %v668, %v667
    %v848 = vpack.c.b16 %v670, %v669
    %v849 = vpack.c.b16 %v672, %v671
    %v850 = vpack.c.b16 %v674, %v673
    %v851 = vpack.c.b16 %v676, %v675
    %v852 = vpack.c.b16 %v678, %v677
    %v853 = vpack.c.b16 %v680, %v679
    %v854 = vpack.c.b16 %v682, %v681
    %v855 = vpack.c.b16 %v684, %v683
    %v856 = vpack.c.b16 %v686, %v685
    %v857 = vpack.c.b16 %v688, %v687
    %v858 = vpack.c.b16 %v690, %v689
    %v859 = vpack.c.b16 %v692, %v691
    %v860 = vpack.c.b16 %v694, %v693
    %v861 = vpack.c.b16 %v696, %v695
    %v862 = vpack.c.b16 %v698, %v697
    %v863 = vpack.c.b16 %v700, %v699
    %v864 = vpack.c.b16 %v702, %v701
    %v865 = vpack.c.b16 %v704, %v703
    %v866 = vpack.c.b16 %v706, %v705
    %v867 = vpack.c.b16 %v708, %v707
    %v868 = vpack.c.b16 %v710, %v709
    %v869 = vpack.c.b16 %v712, %v711
    %v870 = vpack.c.b16 %v714, %v713
    %v871 = vpack.c.b16 %v716, %v715
    %v872 = vpack.c.b16 %v718, %v717
    %v873 = vpack.c.b16 %v720, %v719
    %v874 = vpack.c.b16 %v722, %v721
    %v875 = vpack.c.b16 %v724, %v723
    %v876 = vpack.c.b16 %v726, %v725
    %v877 = vpack.c.b16 %v728, %v727
    %v878 = vpack.c.b16 %v730, %v729
    %v879 = vpack.c.b16 %v732, %v731
    %v880 = vpack.c.b16 %v734, %v733
    %v881 = vpack.c.b16 %v736, %v735
    %v882 = vpack.c.b16 %v738, %v737
    %v883 = vpack.c.b16 %v740, %v739
    %v884 = vpack.c.b16 %v742, %v741
    %v885 = vpack.c.b16 %v744, %v743
    %v886 = vpack.c.b16 %v746, %v745
    %v887 = vpack.c.b16 %v748, %v747
    %v888 = vpack.c.b16 %v750, %v749
    %v889 = vpack.c.b16 %v752, %v751
    %v890 = vpack.c.b16 %v754, %v753
    %v891 = vpack.c.b16 %v756, %v755
    %v892 = vpack.c.b16 %v758, %v757
    %v893 = vpack.c.b16 %v760, %v759
    %v894 = vpack.c.b16 %v762, %v761
    %v895 = vpack.c.b16 %v764, %v763
    %v896 = vpack.c.b16 %v766, %v765
    %v897 = vpack.c.b16 %v768, %v767
    %v898 = vpack.c.b16 %v770, %v769
    %v899 = vpack.c.b16 %v772, %v771
    %v900 = vpack.c.b16 %v774, %v773
    %v901 = vpack.c.b16 %v776, %v775
    %v902 = vpack.c.b16 %v778, %v777
    %v903 = vpack.c.b16 %v780, %v779
    %v904 = vpack.c.b16 %v782, %v781
    %v905 = vpack.c.b16 %v784, %v783
    %v906 = vpack.c.b16 %v786, %v785
    %1027 = vmatprep.subr.bf16.mxu0 0
    %1028 = vmatpush1.bf16.msra.mxu0 %v787
    %1029 = vmatprep.subr.bf16.mxu0 0
    %1030 = vmatpush1.bf16.msra.mxu0 %v788
    %1031 = vmatprep.subr.bf16.mxu0 0
    %1032 = vmatpush1.bf16.msra.mxu0 %v789
    %1033 = vmatprep.subr.bf16.mxu0 0
    %1034 = vmatpush1.bf16.msra.mxu0 %v790
    %1035 = vmatprep.subr.bf16.mxu0 0
    %1036 = vmatpush1.bf16.msra.mxu0 %v791
    %1037 = vmatprep.subr.bf16.mxu0 0
    %1038 = vmatpush1.bf16.msra.mxu0 %v792
    %1039 = vmatprep.subr.bf16.mxu0 0
    %1040 = vmatpush1.bf16.msra.mxu0 %v793
    %1041 = vmatprep.subr.bf16.mxu0 0
    %1042 = vmatpush1.bf16.msra.mxu0 %v794
    %1043 = vmatprep.subr.bf16.mxu0 0
    %1044 = vmatpush1.bf16.msra.mxu0 %v795
    %1045 = vmatprep.subr.bf16.mxu0 0
    %1046 = vmatpush1.bf16.msra.mxu0 %v796
    %1047 = vmatprep.subr.bf16.mxu0 0
    %1048 = vmatpush1.bf16.msra.mxu0 %v797
    %1049 = vmatprep.subr.bf16.mxu0 0
    %1050 = vmatpush1.bf16.msra.mxu0 %v798
    %1051 = vmatprep.subr.bf16.mxu0 0
    %1052 = vmatpush1.bf16.msra.mxu0 %v799
    %1053 = vmatprep.subr.bf16.mxu0 0
    %1054 = vmatpush1.bf16.msra.mxu0 %v800
    %1055 = vmatprep.subr.bf16.mxu0 0
    %1056 = vmatpush1.bf16.msra.mxu0 %v801
    %1057 = vmatprep.subr.bf16.mxu0 0
    %1058 = vmatpush1.bf16.msra.mxu0 %v802
    %1059 = vmatprep.mubr.bf16.mxu0 %v48
    %1060 = vmatmul.mubr.bf16.gmra.mrb[0].mxu0 %v47
    %v1061 = vpop.f32.mrb[0].mxu0
    %v1062 = vadd.f32 %v306, %v1061
    %v1063 = vpop.f32.mrb[0].mxu0
    %v1064 = vpop.f32.mrb[0].mxu0
    %v1065 = vpop.f32.mrb[0].mxu0
    %1066 = vdwg.mxu0
    %1067 = vmatprep.subr.bf16.mxu0 0
    %1068 = vmatpush1.bf16.msra.mxu0 %v803
    %1069 = vmatprep.subr.bf16.mxu0 0
    %1070 = vmatpush1.bf16.msra.mxu0 %v804
    %1071 = vmatprep.subr.bf16.mxu0 0
    %1072 = vmatpush1.bf16.msra.mxu0 %v805
    %1073 = vmatprep.subr.bf16.mxu0 0
    %1074 = vmatpush1.bf16.msra.mxu0 %v806
    %1075 = vmatprep.subr.bf16.mxu0 0
    %1076 = vmatpush1.bf16.msra.mxu0 %v807
    %1077 = vmatprep.subr.bf16.mxu0 0
    %1078 = vmatpush1.bf16.msra.mxu0 %v808
    %1079 = vmatprep.subr.bf16.mxu0 0
    %1080 = vmatpush1.bf16.msra.mxu0 %v809
    %1081 = vmatprep.subr.bf16.mxu0 0
    %1082 = vmatpush1.bf16.msra.mxu0 %v810
    %1083 = vmatprep.subr.bf16.mxu0 0
    %1084 = vmatpush1.bf16.msra.mxu0 %v811
    %1085 = vmatprep.subr.bf16.mxu0 0
    %1086 = vmatpush1.bf16.msra.mxu0 %v812
    %1087 = vmatprep.subr.bf16.mxu0 0
    %1088 = vmatpush1.bf16.msra.mxu0 %v813
    %1089 = vmatprep.subr.bf16.mxu0 0
    %1090 = vmatpush1.bf16.msra.mxu0 %v814
    %1091 = vmatprep.subr.bf16.mxu0 0
    %1092 = vmatpush1.bf16.msra.mxu0 %v815
    %1093 = vmatprep.subr.bf16.mxu0 0
    %1094 = vmatpush1.bf16.msra.mxu0 %v816
    %1095 = vmatprep.subr.bf16.mxu0 0
    %1096 = vmatpush1.bf16.msra.mxu0 %v817
    %1097 = vmatprep.subr.bf16.mxu0 0
    %1098 = vmatpush1.bf16.msra.mxu0 %v818
    %1099 = vmatprep.mubr.bf16.mxu0 %v50
    %1100 = vmatmul.mubr.bf16.gmra.mrb[0].mxu0 %v49
    %v1101 = vpop.f32.mrb[0].mxu0
    %v1102 = vadd.f32 %v1062, %v1101
    %v1103 = vpop.f32.mrb[0].mxu0
    %v1104 = vpop.f32.mrb[0].mxu0
    %v1105 = vpop.f32.mrb[0].mxu0
    %1106 = vdwg.mxu0
    %1107 = vmatprep.subr.bf16.mxu0 0
    %1108 = vmatpush1.bf16.msra.mxu0 %v819
    %1109 = vmatprep.subr.bf16.mxu0 0
    %1110 = vmatpush1.bf16.msra.mxu0 %v820
    %1111 = vmatprep.subr.bf16.mxu0 0
    %1112 = vmatpush1.bf16.msra.mxu0 %v821
    %1113 = vmatprep.subr.bf16.mxu0 0
    %1114 = vmatpush1.bf16.msra.mxu0 %v822
    %1115 = vmatprep.subr.bf16.mxu0 0
    %1116 = vmatpush1.bf16.msra.mxu0 %v823
    %1117 = vmatprep.subr.bf16.mxu0 0
    %1118 = vmatpush1.bf16.msra.mxu0 %v824
    %1119 = vmatprep.subr.bf16.mxu0 0
    %1120 = vmatpush1.bf16.msra.mxu0 %v825
    %1121 = vmatprep.subr.bf16.mxu0 0
    %1122 = vmatpush1.bf16.msra.mxu0 %v826
    %1123 = vmatprep.subr.bf16.mxu0 0
    %1124 = vmatpush1.bf16.msra.mxu0 %v827
    %1125 = vmatprep.subr.bf16.mxu0 0
    %1126 = vmatpush1.bf16.msra.mxu0 %v828
    %1127 = vmatprep.subr.bf16.mxu0 0
    %1128 = vmatpush1.bf16.msra.mxu0 %v829
    %1129 = vmatprep.subr.bf16.mxu0 0
    %1130 = vmatpush1.bf16.msra.mxu0 %v830
    %1131 = vmatprep.subr.bf16.mxu0 0
    %1132 = vmatpush1.bf16.msra.mxu0 %v831
    %1133 = vmatprep.subr.bf16.mxu0 0
    %1134 = vmatpush1.bf16.msra.mxu0 %v832
    %1135 = vmatprep.subr.bf16.mxu0 0
    %1136 = vmatpush1.bf16.msra.mxu0 %v833
    %1137 = vmatprep.subr.bf16.mxu0 0
    %1138 = vmatpush1.bf16.msra.mxu0 %v834
    %1139 = vmatprep.mubr.bf16.mxu0 %v52
    %1140 = vmatmul.mubr.bf16.gmra.mrb[0].mxu0 %v51
    %v1141 = vpop.f32.mrb[0].mxu0
    %v1142 = vadd.f32 %v1102, %v1141
    %v1143 = vpop.f32.mrb[0].mxu0
    %v1144 = vpop.f32.mrb[0].mxu0
    %v1145 = vpop.f32.mrb[0].mxu0
    %1146 = vdwg.mxu0
    %1147 = vmatprep.subr.bf16.mxu0 0
    %1148 = vmatpush1.bf16.msra.mxu0 %v835
    %1149 = vmatprep.subr.bf16.mxu0 0
    %1150 = vmatpush1.bf16.msra.mxu0 %v836
    %1151 = vmatprep.subr.bf16.mxu0 0
    %1152 = vmatpush1.bf16.msra.mxu0 %v837
    %1153 = vmatprep.subr.bf16.mxu0 0
    %1154 = vmatpush1.bf16.msra.mxu0 %v838
    %1155 = vmatprep.subr.bf16.mxu0 0
    %1156 = vmatpush1.bf16.msra.mxu0 %v839
    %1157 = vmatprep.subr.bf16.mxu0 0
    %1158 = vmatpush1.bf16.msra.mxu0 %v840
    %1159 = vmatprep.subr.bf16.mxu0 0
    %1160 = vmatpush1.bf16.msra.mxu0 %v841
    %1161 = vmatprep.subr.bf16.mxu0 0
    %1162 = vmatpush1.bf16.msra.mxu0 %v842
    %1163 = vmatprep.subr.bf16.mxu0 0
    %1164 = vmatpush1.bf16.msra.mxu0 %v843
    %1165 = vmatprep.subr.bf16.mxu0 0
    %1166 = vmatpush1.bf16.msra.mxu0 %v844
    %1167 = vmatprep.subr.bf16.mxu0 0
    %1168 = vmatpush1.bf16.msra.mxu0 %v845
    %1169 = vmatprep.subr.bf16.mxu0 0
    %1170 = vmatpush1.bf16.msra.mxu0 %v846
    %1171 = vmatprep.subr.bf16.mxu0 0
    %1172 = vmatpush1.bf16.msra.mxu0 %v847
    %1173 = vmatprep.subr.bf16.mxu0 0
    %1174 = vmatpush1.bf16.msra.mxu0 %v848
    %1175 = vmatprep.subr.bf16.mxu0 0
    %1176 = vmatpush1.bf16.msra.mxu0 %v849
    %1177 = vmatprep.subr.bf16.mxu0 0
    %1178 = vmatpush1.bf16.msra.mxu0 %v850
    %1179 = vmatprep.mubr.bf16.mxu0 %v54
    %1180 = vmatmul.mubr.bf16.gmra.mrb[0].mxu0 %v53
    %v1181 = vpop.f32.mrb[0].mxu0
    %v1182 = vadd.f32 %v1142, %v1181
    %v1183 = vpop.f32.mrb[0].mxu0
    %v1184 = vpop.f32.mrb[0].mxu0
    %v1185 = vpop.f32.mrb[0].mxu0
    %1186 = vdwg.mxu0
    %1187 = vmatprep.subr.bf16.mxu0 0
    %1188 = vmatpush1.bf16.msra.mxu0 %v851
    %1189 = vmatprep.subr.bf16.mxu0 0
    %1190 = vmatpush1.bf16.msra.mxu0 %v852
    %1191 = vmatprep.subr.bf16.mxu0 0
    %1192 = vmatpush1.bf16.msra.mxu0 %v853
    %1193 = vmatprep.subr.bf16.mxu0 0
    %1194 = vmatpush1.bf16.msra.mxu0 %v854
    %1195 = vmatprep.subr.bf16.mxu0 0
    %1196 = vmatpush1.bf16.msra.mxu0 %v855
    %1197 = vmatprep.subr.bf16.mxu0 0
    %1198 = vmatpush1.bf16.msra.mxu0 %v856
    %1199 = vmatprep.subr.bf16.mxu0 0
    %1200 = vmatpush1.bf16.msra.mxu0 %v857
    %1201 = vmatprep.subr.bf16.mxu0 0
    %1202 = vmatpush1.bf16.msra.mxu0 %v858
    %1203 = vmatprep.subr.bf16.mxu0 0
    %1204 = vmatpush1.bf16.msra.mxu0 %v859
    %1205 = vmatprep.subr.bf16.mxu0 0
    %1206 = vmatpush1.bf16.msra.mxu0 %v860
    %1207 = vmatprep.subr.bf16.mxu0 0
    %1208 = vmatpush1.bf16.msra.mxu0 %v861
    %1209 = vmatprep.subr.bf16.mxu0 0
    %1210 = vmatpush1.bf16.msra.mxu0 %v862
    %1211 = vmatprep.subr.bf16.mxu0 0
    %1212 = vmatpush1.bf16.msra.mxu0 %v863
    %1213 = vmatprep.subr.bf16.mxu0 0
    %1214 = vmatpush1.bf16.msra.mxu0 %v864
    %1215 = vmatprep.subr.bf16.mxu0 0
    %1216 = vmatpush1.bf16.msra.mxu0 %v865
    %1217 = vmatprep.subr.bf16.mxu0 0
    %1218 = vmatpush1.bf16.msra.mxu0 %v866
    %1219 = vmatprep.mubr.bf16.mxu0 %v56
    %1220 = vmatmul.mubr.bf16.gmra.mrb[0].mxu0 %v55
    %v1221 = vpop.f32.mrb[0].mxu0
    %v1222 = vadd.f32 %v1182, %v1221
    %v1223 = vpop.f32.mrb[0].mxu0
    %v1224 = vpop.f32.mrb[0].mxu0
    %v1225 = vpop.f32.mrb[0].mxu0
    %1226 = vdwg.mxu0
    %1227 = vmatprep.subr.bf16.mxu0 0
    %1228 = vmatpush1.bf16.msra.mxu0 %v867
    %1229 = vmatprep.subr.bf16.mxu0 0
    %1230 = vmatpush1.bf16.msra.mxu0 %v868
    %1231 = vmatprep.subr.bf16.mxu0 0
    %1232 = vmatpush1.bf16.msra.mxu0 %v869
    %1233 = vmatprep.subr.bf16.mxu0 0
    %1234 = vmatpush1.bf16.msra.mxu0 %v870
    %1235 = vmatprep.subr.bf16.mxu0 0
    %1236 = vmatpush1.bf16.msra.mxu0 %v871
    %1237 = vmatprep.subr.bf16.mxu0 0
    %1238 = vmatpush1.bf16.msra.mxu0 %v872
    %1239 = vmatprep.subr.bf16.mxu0 0
    %1240 = vmatpush1.bf16.msra.mxu0 %v873
    %1241 = vmatprep.subr.bf16.mxu0 0
    %1242 = vmatpush1.bf16.msra.mxu0 %v874
    %1243 = vmatprep.subr.bf16.mxu0 0
    %1244 = vmatpush1.bf16.msra.mxu0 %v875
    %1245 = vmatprep.subr.bf16.mxu0 0
    %1246 = vmatpush1.bf16.msra.mxu0 %v876
    %1247 = vmatprep.subr.bf16.mxu0 0
    %1248 = vmatpush1.bf16.msra.mxu0 %v877
    %1249 = vmatprep.subr.bf16.mxu0 0
    %1250 = vmatpush1.bf16.msra.mxu0 %v878
    %1251 = vmatprep.subr.bf16.mxu0 0
    %1252 = vmatpush1.bf16.msra.mxu0 %v879
    %1253 = vmatprep.subr.bf16.mxu0 0
    %1254 = vmatpush1.bf16.msra.mxu0 %v880
    %1255 = vmatprep.subr.bf16.mxu0 0
    %1256 = vmatpush1.bf16.msra.mxu0 %v881
    %1257 = vmatprep.subr.bf16.mxu0 0
    %1258 = vmatpush1.bf16.msra.mxu0 %v882
    %1259 = vmatprep.mubr.bf16.mxu0 %v58
    %1260 = vmatmul.mubr.bf16.gmra.mrb[0].mxu0 %v57
    %v1261 = vpop.f32.mrb[0].mxu0
    %v1262 = vadd.f32 %v1222, %v1261
    %v1263 = vpop.f32.mrb[0].mxu0
    %v1264 = vpop.f32.mrb[0].mxu0
    %v1265 = vpop.f32.mrb[0].mxu0
    %1266 = vdwg.mxu0
    %1267 = vmatprep.subr.bf16.mxu0 0
    %1268 = vmatpush1.bf16.msra.mxu0 %v883
    %1269 = vmatprep.subr.bf16.mxu0 0
    %1270 = vmatpush1.bf16.msra.mxu0 %v884
    %1271 = vmatprep.subr.bf16.mxu0 0
    %1272 = vmatpush1.bf16.msra.mxu0 %v885
    %1273 = vmatprep.subr.bf16.mxu0 0
    %1274 = vmatpush1.bf16.msra.mxu0 %v886
    %1275 = vmatprep.subr.bf16.mxu0 0
    %1276 = vmatpush1.bf16.msra.mxu0 %v887
    %1277 = vmatprep.subr.bf16.mxu0 0
    %1278 = vmatpush1.bf16.msra.mxu0 %v888
    %1279 = vmatprep.subr.bf16.mxu0 0
    %1280 = vmatpush1.bf16.msra.mxu0 %v889
    %1281 = vmatprep.subr.bf16.mxu0 0
    %1282 = vmatpush1.bf16.msra.mxu0 %v890
    %1283 = vmatprep.subr.bf16.mxu0 0
    %1284 = vmatpush1.bf16.msra.mxu0 %v891
    %1285 = vmatprep.subr.bf16.mxu0 0
    %1286 = vmatpush1.bf16.msra.mxu0 %v892
    %1287 = vmatprep.subr.bf16.mxu0 0
    %1288 = vmatpush1.bf16.msra.mxu0 %v893
    %1289 = vmatprep.subr.bf16.mxu0 0
    %1290 = vmatpush1.bf16.msra.mxu0 %v894
    %1291 = vmatprep.subr.bf16.mxu0 0
    %1292 = vmatpush1.bf16.msra.mxu0 %v895
    %1293 = vmatprep.subr.bf16.mxu0 0
    %1294 = vmatpush1.bf16.msra.mxu0 %v896
    %1295 = vmatprep.subr.bf16.mxu0 0
    %1296 = vmatpush1.bf16.msra.mxu0 %v897
    %1297 = vmatprep.subr.bf16.mxu0 0
    %1298 = vmatpush1.bf16.msra.mxu0 %v898
    %1299 = vmatprep.mubr.bf16.mxu0 %v60
    %1300 = vmatmul.mubr.bf16.gmra.mrb[0].mxu0 %v59
    %v1301 = vpop.f32.mrb[0].mxu0
    %v1302 = vadd.f32 %v1262, %v1301
    %v1303 = vpop.f32.mrb[0].mxu0
    %v1304 = vpop.f32.mrb[0].mxu0
    %v1305 = vpop.f32.mrb[0].mxu0
    %1306 = vdwg.mxu0
    %1307 = vmatprep.subr.bf16.mxu0 0
    %1308 = vmatpush1.bf16.msra.mxu0 %v899
    %1309 = vmatprep.subr.bf16.mxu0 0
    %1310 = vmatpush1.bf16.msra.mxu0 %v900
    %1311 = vmatprep.subr.bf16.mxu0 0
    %1312 = vmatpush1.bf16.msra.mxu0 %v901
    %1313 = vmatprep.subr.bf16.mxu0 0
    %1314 = vmatpush1.bf16.msra.mxu0 %v902
    %1315 = vmatprep.subr.bf16.mxu0 0
    %1316 = vmatpush1.bf16.msra.mxu0 %v903
    %1317 = vmatprep.subr.bf16.mxu0 0
    %1318 = vmatpush1.bf16.msra.mxu0 %v904
    %1319 = vmatprep.subr.bf16.mxu0 0
    %1320 = vmatpush1.bf16.msra.mxu0 %v905
    %1321 = vmatprep.subr.bf16.mxu0 0
    %1322 = vmatpush1.bf16.msra.mxu0 %v906
    %1323 = vmatprep.subr.bf16.mxu0 0
    %1324 = vmatpush1.bf16.msra.mxu0 0
    %1325 = vmatprep.subr.bf16.mxu0 0
    %1326 = vmatpush1.bf16.msra.mxu0 0
    %1327 = vmatprep.subr.bf16.mxu0 0
    %1328 = vmatpush1.bf16.msra.mxu0 0
    %1329 = vmatprep.subr.bf16.mxu0 0
    %1330 = vmatpush1.bf16.msra.mxu0 0
    %1331 = vmatprep.subr.bf16.mxu0 0
    %1332 = vmatpush1.bf16.msra.mxu0 0
    %1333 = vmatprep.subr.bf16.mxu0 0
    %1334 = vmatpush1.bf16.msra.mxu0 0
    %1335 = vmatprep.subr.bf16.mxu0 0
    %1336 = vmatpush1.bf16.msra.mxu0 0
    %1337 = vmatprep.subr.bf16.mxu0 0
    %1338 = vmatpush1.bf16.msra.mxu0 0
    %1339 = vmatprep.mubr.bf16.mxu0 0
    %1340 = vmatmul.mubr.bf16.gmra.mrb[0].mxu0 %v61
    %v1341 = vpop.f32.mrb[0].mxu0
    %v1342 = vadd.f32 %v1302, %v1341
    %v1343 = vpop.f32.mrb[0].mxu0
    %v1344 = vpop.f32.mrb[0].mxu0
    %v1345 = vpop.f32.mrb[0].mxu0
    %1346 = vdwg.mxu0
    %vm1347 = vcmp.gt.f32.partialorder %v1342, 0.0
    %v1348 = vmul.f32 %v1342, 0.01
    %v1349 = vsel %vm1347, %v1342, %v1348
    %v1350 = vpack.c.bf16 %v1349, %v1349
    %v1351 = vld [vmem:[%s2] sm:$0xf]
    %v1352 = vld [vmem:[%s2 + $0x4] sm:$0xf]
    %v1353 = vld [vmem:[%s2 + $0x8] sm:$0xf]
    %v1354 = vld [vmem:[%s2 + $0xc] sm:$0xf]
    %v1355 = vld [vmem:[%s2 + $0x10] sm:$0xf]
    %v1356 = vld [vmem:[%s2 + $0x14] sm:$0xf]
    %v1357 = vld [vmem:[%s2 + $0x18] sm:$0xf]
    %v1358 = vld [vmem:[%s2 + $0x1c] sm:$0xf]
    %v1359 = vld [vmem:[%s2 + $0x20] sm:$0xf]
    %v1360 = vld [vmem:[%s2 + $0x24] sm:$0xf]
    %v1361 = vld [vmem:[%s2 + $0x28] sm:$0xf]
    %v1362 = vld [vmem:[%s2 + $0x2c] sm:$0xf]
    %v1363 = vld [vmem:[%s2 + $0x30] sm:$0xf]
    %v1364 = vld [vmem:[%s2 + $0x34] sm:$0xf]
    %v1365 = vld [vmem:[%s2 + $0x38] sm:$0xf]
    %v1366 = vld [vmem:[%s2 + $0x3c] sm:$0xf]
    %v1367 = vld [vmem:[%s3 + $0x1] sm:$0x1]
    %v1368 = vlaneseq
    %v1369 = vshrl.u32 %v1368, 7
    %v1370 = vsub.s32 0, %v1369
    %v1371 = vrot.slane %v1367, %v1370
    %v1388 = vunpack.c.l.b16 %v1351
    %v1389 = vunpack.c.l.b16 %v1352
    %v1390 = vunpack.c.l.b16 %v1353
    %v1391 = vunpack.c.l.b16 %v1354
    %v1392 = vunpack.c.l.b16 %v1355
    %v1393 = vunpack.c.l.b16 %v1356
    %v1394 = vunpack.c.l.b16 %v1357
    %v1395 = vunpack.c.l.b16 %v1358
    %v1396 = vunpack.c.l.b16 %v1359
    %v1397 = vunpack.c.l.b16 %v1360
    %v1398 = vunpack.c.l.b16 %v1361
    %v1399 = vunpack.c.l.b16 %v1362
    %v1400 = vunpack.c.l.b16 %v1363
    %v1401 = vunpack.c.l.b16 %v1364
    %v1402 = vunpack.c.l.b16 %v1365
    %v1403 = vunpack.c.l.b16 %v1366
    %v1404 = vpack.c.b16 %v1389, %v1388
    %v1405 = vpack.c.b16 %v1391, %v1390
    %v1406 = vpack.c.b16 %v1393, %v1392
    %v1407 = vpack.c.b16 %v1395, %v1394
    %v1408 = vpack.c.b16 %v1397, %v1396
    %v1409 = vpack.c.b16 %v1399, %v1398
    %v1410 = vpack.c.b16 %v1401, %v1400
    %v1411 = vpack.c.b16 %v1403, %v1402
    %1420 = vmatprep.subr.bf16.mxu0 0
    %1421 = vmatpush1.bf16.msra.mxu0 %v1404
    %1422 = vmatprep.subr.bf16.mxu0 0
    %1423 = vmatpush1.bf16.msra.mxu0 %v1405
    %1424 = vmatprep.subr.bf16.mxu0 0
    %1425 = vmatpush1.bf16.msra.mxu0 %v1406
    %1426 = vmatprep.subr.bf16.mxu0 0
    %1427 = vmatpush1.bf16.msra.mxu0 %v1407
    %1428 = vmatprep.subr.bf16.mxu0 0
    %1429 = vmatpush1.bf16.msra.mxu0 %v1408
    %1430 = vmatprep.subr.bf16.mxu0 0
    %1431 = vmatpush1.bf16.msra.mxu0 %v1409
    %1432 = vmatprep.subr.bf16.mxu0 0
    %1433 = vmatpush1.bf16.msra.mxu0 %v1410
    %1434 = vmatprep.subr.bf16.mxu0 0
    %1435 = vmatpush1.bf16.msra.mxu0 %v1411
    %1436 = vmatprep.subr.bf16.mxu0 0
    %1437 = vmatpush1.bf16.msra.mxu0 0
    %1438 = vmatprep.subr.bf16.mxu0 0
    %1439 = vmatpush1.bf16.msra.mxu0 0
    %1440 = vmatprep.subr.bf16.mxu0 0
    %1441 = vmatpush1.bf16.msra.mxu0 0
    %1442 = vmatprep.subr.bf16.mxu0 0
    %1443 = vmatpush1.bf16.msra.mxu0 0
    %1444 = vmatprep.subr.bf16.mxu0 0
    %1445 = vmatpush1.bf16.msra.mxu0 0
    %1446 = vmatprep.subr.bf16.mxu0 0
    %1447 = vmatpush1.bf16.msra.mxu0 0
    %1448 = vmatprep.subr.bf16.mxu0 0
    %1449 = vmatpush1.bf16.msra.mxu0 0
    %1450 = vmatprep.subr.bf16.mxu0 0
    %1451 = vmatpush1.bf16.msra.mxu0 0
    %1452 = vmatprep.mubr.bf16.mxu0 0
    %1453 = vmatmul.mubr.bf16.gmra.mrb[0].mxu0 %v1350
    %v1454 = vpop.f32.mrb[0].mxu0
    %v1455 = vadd.f32 %v1371, %v1454
    %v1456 = vpop.f32.mrb[0].mxu0
    %v1457 = vpop.f32.mrb[0].mxu0
    %v1458 = vpop.f32.mrb[0].mxu0
    %1459 = vdwg.mxu0
    %vm1460 = vcmp.gt.f32.partialorder %v1455, 0.0
    %v1461 = vmul.f32 %v1455, 0.01
    %v1462 = vsel %vm1460, %v1455, %v1461
    %v1463 = vpack.c.bf16 %v1462, %v1462
    %s1464 = scalar_lea.vmem %s2, 64
    %v1465 = vld [vmem:[%s1464] sm:$0xf]
    %v1466 = vld [vmem:[%s1464 + $0x4] sm:$0xf]
    %v1467 = vld [vmem:[%s1464 + $0x8] sm:$0xf]
    %v1468 = vld [vmem:[%s1464 + $0xc] sm:$0xf]
    %v1469 = vld [vmem:[%s1464 + $0x10] sm:$0xf]
    %v1470 = vld [vmem:[%s1464 + $0x14] sm:$0xf]
    %v1471 = vld [vmem:[%s1464 + $0x18] sm:$0xf]
    %v1472 = vld [vmem:[%s1464 + $0x1c] sm:$0xf]
    %v1473 = vld [vmem:[%s1464 + $0x20] sm:$0xf]
    %v1474 = vld [vmem:[%s1464 + $0x24] sm:$0xf]
    %v1475 = vld [vmem:[%s1464 + $0x28] sm:$0xf]
    %v1476 = vld [vmem:[%s1464 + $0x2c] sm:$0xf]
    %v1477 = vld [vmem:[%s1464 + $0x30] sm:$0xf]
    %v1478 = vld [vmem:[%s1464 + $0x34] sm:$0xf]
    %v1479 = vld [vmem:[%s1464 + $0x38] sm:$0xf]
    %v1480 = vld [vmem:[%s1464 + $0x3c] sm:$0xf]
    %v1481 = vld [vmem:[%s3 + $0x2] sm:$0x1]
    %v1482 = vlaneseq
    %v1483 = vshrl.u32 %v1482, 7
    %v1484 = vsub.s32 0, %v1483
    %v1485 = vrot.slane %v1481, %v1484
    %v1502 = vunpack.c.l.b16 %v1465
    %v1503 = vunpack.c.l.b16 %v1466
    %v1504 = vunpack.c.l.b16 %v1467
    %v1505 = vunpack.c.l.b16 %v1468
    %v1506 = vunpack.c.l.b16 %v1469
    %v1507 = vunpack.c.l.b16 %v1470
    %v1508 = vunpack.c.l.b16 %v1471
    %v1509 = vunpack.c.l.b16 %v1472
    %v1510 = vunpack.c.l.b16 %v1473
    %v1511 = vunpack.c.l.b16 %v1474
    %v1512 = vunpack.c.l.b16 %v1475
    %v1513 = vunpack.c.l.b16 %v1476
    %v1514 = vunpack.c.l.b16 %v1477
    %v1515 = vunpack.c.l.b16 %v1478
    %v1516 = vunpack.c.l.b16 %v1479
    %v1517 = vunpack.c.l.b16 %v1480
    %v1518 = vpack.c.b16 %v1503, %v1502
    %v1519 = vpack.c.b16 %v1505, %v1504
    %v1520 = vpack.c.b16 %v1507, %v1506
    %v1521 = vpack.c.b16 %v1509, %v1508
    %v1522 = vpack.c.b16 %v1511, %v1510
    %v1523 = vpack.c.b16 %v1513, %v1512
    %v1524 = vpack.c.b16 %v1515, %v1514
    %v1525 = vpack.c.b16 %v1517, %v1516
    %1534 = vmatprep.subr.bf16.mxu0 0
    %1535 = vmatpush1.bf16.msra.mxu0 %v1518
    %1536 = vmatprep.subr.bf16.mxu0 0
    %1537 = vmatpush1.bf16.msra.mxu0 %v1519
    %1538 = vmatprep.subr.bf16.mxu0 0
    %1539 = vmatpush1.bf16.msra.mxu0 %v1520
    %1540 = vmatprep.subr.bf16.mxu0 0
    %1541 = vmatpush1.bf16.msra.mxu0 %v1521
    %1542 = vmatprep.subr.bf16.mxu0 0
    %1543 = vmatpush1.bf16.msra.mxu0 %v1522
    %1544 = vmatprep.subr.bf16.mxu0 0
    %1545 = vmatpush1.bf16.msra.mxu0 %v1523
    %1546 = vmatprep.subr.bf16.mxu0 0
    %1547 = vmatpush1.bf16.msra.mxu0 %v1524
    %1548 = vmatprep.subr.bf16.mxu0 0
    %1549 = vmatpush1.bf16.msra.mxu0 %v1525
    %1550 = vmatprep.subr.bf16.mxu0 0
    %1551 = vmatpush1.bf16.msra.mxu0 0
    %1552 = vmatprep.subr.bf16.mxu0 0
    %1553 = vmatpush1.bf16.msra.mxu0 0
    %1554 = vmatprep.subr.bf16.mxu0 0
    %1555 = vmatpush1.bf16.msra.mxu0 0
    %1556 = vmatprep.subr.bf16.mxu0 0
    %1557 = vmatpush1.bf16.msra.mxu0 0
    %1558 = vmatprep.subr.bf16.mxu0 0
    %1559 = vmatpush1.bf16.msra.mxu0 0
    %1560 = vmatprep.subr.bf16.mxu0 0
    %1561 = vmatpush1.bf16.msra.mxu0 0
    %1562 = vmatprep.subr.bf16.mxu0 0
    %1563 = vmatpush1.bf16.msra.mxu0 0
    %1564 = vmatprep.subr.bf16.mxu0 0
    %1565 = vmatpush1.bf16.msra.mxu0 0
    %1566 = vmatprep.mubr.bf16.mxu0 0
    %1567 = vmatmul.mubr.bf16.gmra.mrb[0].mxu0 %v1463
    %v1568 = vpop.f32.mrb[0].mxu0
    %v1569 = vadd.f32 %v1485, %v1568
    %v1570 = vpop.f32.mrb[0].mxu0
    %v1571 = vpop.f32.mrb[0].mxu0
    %v1572 = vpop.f32.mrb[0].mxu0
    %1573 = vdwg.mxu0
    %vm1574 = vcmp.gt.f32.partialorder %v1569, 0.0
    %v1575 = vmul.f32 %v1569, 0.01
    %v1576 = vsel %vm1574, %v1569, %v1575
    %v1577 = vpack.c.bf16 %v1576, %v1576
    %s1578 = scalar_lea.vmem %s2, 128
    %v1579 = vld [vmem:[%s1578] sm:$0xf]
    %v1580 = vld [vmem:[%s1578 + $0x4] sm:$0xf]
    %v1581 = vld [vmem:[%s1578 + $0x8] sm:$0xf]
    %v1582 = vld [vmem:[%s1578 + $0xc] sm:$0xf]
    %v1583 = vld [vmem:[%s1578 + $0x10] sm:$0xf]
    %v1584 = vld [vmem:[%s1578 + $0x14] sm:$0xf]
    %v1585 = vld [vmem:[%s1578 + $0x18] sm:$0xf]
    %v1586 = vld [vmem:[%s1578 + $0x1c] sm:$0xf]
    %v1587 = vld [vmem:[%s1578 + $0x20] sm:$0xf]
    %v1588 = vld [vmem:[%s1578 + $0x24] sm:$0xf]
    %v1589 = vld [vmem:[%s1578 + $0x28] sm:$0xf]
    %v1590 = vld [vmem:[%s1578 + $0x2c] sm:$0xf]
    %v1591 = vld [vmem:[%s1578 + $0x30] sm:$0xf]
    %v1592 = vld [vmem:[%s1578 + $0x34] sm:$0xf]
    %v1593 = vld [vmem:[%s1578 + $0x38] sm:$0xf]
    %v1594 = vld [vmem:[%s1578 + $0x3c] sm:$0xf]
    %v1595 = vld [vmem:[%s3 + $0x3] sm:$0x1]
    %v1596 = vlaneseq
    %v1597 = vshrl.u32 %v1596, 7
    %v1598 = vsub.s32 0, %v1597
    %v1599 = vrot.slane %v1595, %v1598
    %v1616 = vunpack.c.l.b16 %v1579
    %v1617 = vunpack.c.l.b16 %v1580
    %v1618 = vunpack.c.l.b16 %v1581
    %v1619 = vunpack.c.l.b16 %v1582
    %v1620 = vunpack.c.l.b16 %v1583
    %v1621 = vunpack.c.l.b16 %v1584
    %v1622 = vunpack.c.l.b16 %v1585
    %v1623 = vunpack.c.l.b16 %v1586
    %v1624 = vunpack.c.l.b16 %v1587
    %v1625 = vunpack.c.l.b16 %v1588
    %v1626 = vunpack.c.l.b16 %v1589
    %v1627 = vunpack.c.l.b16 %v1590
    %v1628 = vunpack.c.l.b16 %v1591
    %v1629 = vunpack.c.l.b16 %v1592
    %v1630 = vunpack.c.l.b16 %v1593
    %v1631 = vunpack.c.l.b16 %v1594
    %v1632 = vpack.c.b16 %v1617, %v1616
    %v1633 = vpack.c.b16 %v1619, %v1618
    %v1634 = vpack.c.b16 %v1621, %v1620
    %v1635 = vpack.c.b16 %v1623, %v1622
    %v1636 = vpack.c.b16 %v1625, %v1624
    %v1637 = vpack.c.b16 %v1627, %v1626
    %v1638 = vpack.c.b16 %v1629, %v1628
    %v1639 = vpack.c.b16 %v1631, %v1630
    %1648 = vmatprep.subr.bf16.mxu0 0
    %1649 = vmatpush1.bf16.msra.mxu0 %v1632
    %1650 = vmatprep.subr.bf16.mxu0 0
    %1651 = vmatpush1.bf16.msra.mxu0 %v1633
    %1652 = vmatprep.subr.bf16.mxu0 0
    %1653 = vmatpush1.bf16.msra.mxu0 %v1634
    %1654 = vmatprep.subr.bf16.mxu0 0
    %1655 = vmatpush1.bf16.msra.mxu0 %v1635
    %1656 = vmatprep.subr.bf16.mxu0 0
    %1657 = vmatpush1.bf16.msra.mxu0 %v1636
    %1658 = vmatprep.subr.bf16.mxu0 0
    %1659 = vmatpush1.bf16.msra.mxu0 %v1637
    %1660 = vmatprep.subr.bf16.mxu0 0
    %1661 = vmatpush1.bf16.msra.mxu0 %v1638
    %1662 = vmatprep.subr.bf16.mxu0 0
    %1663 = vmatpush1.bf16.msra.mxu0 %v1639
    %1664 = vmatprep.subr.bf16.mxu0 0
    %1665 = vmatpush1.bf16.msra.mxu0 0
    %1666 = vmatprep.subr.bf16.mxu0 0
    %1667 = vmatpush1.bf16.msra.mxu0 0
    %1668 = vmatprep.subr.bf16.mxu0 0
    %1669 = vmatpush1.bf16.msra.mxu0 0
    %1670 = vmatprep.subr.bf16.mxu0 0
    %1671 = vmatpush1.bf16.msra.mxu0 0
    %1672 = vmatprep.subr.bf16.mxu0 0
    %1673 = vmatpush1.bf16.msra.mxu0 0
    %1674 = vmatprep.subr.bf16.mxu0 0
    %1675 = vmatpush1.bf16.msra.mxu0 0
    %1676 = vmatprep.subr.bf16.mxu0 0
    %1677 = vmatpush1.bf16.msra.mxu0 0
    %1678 = vmatprep.subr.bf16.mxu0 0
    %1679 = vmatpush1.bf16.msra.mxu0 0
    %1680 = vmatprep.mubr.bf16.mxu0 0
    %1681 = vmatmul.mubr.bf16.gmra.mrb[0].mxu0 %v1577
    %v1682 = vpop.f32.mrb[0].mxu0
    %v1683 = vadd.f32 %v1599, %v1682
    %v1684 = vpop.f32.mrb[0].mxu0
    %v1685 = vpop.f32.mrb[0].mxu0
    %v1686 = vpop.f32.mrb[0].mxu0
    %1687 = vdwg.mxu0
    %1688 = vst [vmem:[%s4] sm:$0xff] %v1683
    // Predicated region
    $region22: #{model_plant_forward.1} parent=1 // pred_check
      _
    $region23: #{model_plant_forward.1} parent=1 // pred_check_branch
      %1690 = sbr.rel (0) target = $region25
    $region24: #{model_plant_forward.1} parent=1 // pred_region
      _
    $region25: #{model_plant_forward.1} parent=1 // pred_fallthru
      _
    // Predicated region
    $region26: #{model_plant_forward.1} parent=1 // pred_check
      _
    $region27: #{model_plant_forward.1} parent=1 // pred_check_branch
      %1692 = sbr.rel (0) target = $region29
    $region28: #{model_plant_forward.1} parent=1 // pred_region
      _
    $region29: #{model_plant_forward.1} parent=1 // pred_fallthru
      _
    %1693 = vsyncpa [#allocation3], 1

</llo_original>
